<compile_context>
chip_gen: v6e
topology: v6e:2x2x1
jax: 0.10.0
libtpu: 0.0.40
codegen_flags: <defaults>
</compile_context>

<pallas_src>
import math

import jax
import jax.numpy as jnp
from jax import lax
from jax.experimental import pallas as pl
from jax.experimental.pallas import tpu as pltpu

# ---------------- model dims (small, but lane-dense) ----------------
B = 2            # batch
S = 8            # sequence length
D = 128          # hidden size (multiple of 128 -> lane-dense)
H = 4            # attention heads
HD = D // H      # head dim = 32
I = 4 * D        # MLP inner dim = 512
EPS = 1e-5       # layer_norm_epsilon
MASK_VALUE = -10000.0   # masked_bias in GPT2AttentionFlex


def _layer_norm(h, gamma, beta):
    mu = jnp.mean(h, axis=-1, keepdims=True)
    var = jnp.mean(jnp.square(h - mu), axis=-1, keepdims=True)
    return (h - mu) * lax.rsqrt(var + EPS) * gamma + beta


def _gelu_new(x):
    # ACT2FN["gelu_new"]: 0.5*x*(1+tanh(sqrt(2/pi)*(x+0.044715*x^3)))
    c = math.sqrt(2.0 / math.pi)
    return 0.5 * x * (1.0 + jnp.tanh(c * (x + 0.044715 * x * x * x)))


def gpt2_block_kernel(x_ref,
                      ln1_g, ln1_b,
                      w_attn, b_attn,
                      w_aproj, b_aproj,
                      ln2_g, ln2_b,
                      w_fc, b_fc,
                      w_mproj, b_mproj,
                      out_ref):
    x = x_ref[...]                                          # (S, D) f32, one batch elem

    # ---- ln_1 ----
    h = _layer_norm(x, ln1_g[...], ln1_b[...])              # (S, D) f32

    # ---- attention: c_attn -> per-head causal softmax -> c_proj ----
    qkv = jnp.dot(h.astype(jnp.bfloat16), w_attn[...],
                  preferred_element_type=jnp.float32) + b_attn[...]   # (S, 3D) f32

    scale = 1.0 / math.sqrt(float(HD))                      # scale_attn_weights
    q = qkv[:, 0:D] * scale                                 # scale folded into q (S*D elems)
    k = qkv[:, D:2 * D]
    v = qkv[:, 2 * D:3 * D]

    # head-major (H, S, HD): one reshape + axis swap each, no per-head loop.
    to_heads = lambda t: jnp.swapaxes(t.reshape(S, H, HD), 0, 1)
    q3, k3, v3 = to_heads(q), to_heads(k), to_heads(v)

    s = jnp.einsum('hqd,hkd->hqk', q3, k3,
                   preferred_element_type=jnp.float32)      # (H, S, S) f32

    # causal mask built in-kernel (no mask DMA; per-batch grid -> no cross-batch term)
    row = lax.broadcasted_iota(jnp.int32, (S, S), 0)
    col = lax.broadcasted_iota(jnp.int32, (S, S), 1)
    s = jnp.where((col <= row)[None], s, jnp.float32(MASK_VALUE))

    s = s - jnp.max(s, axis=-1, keepdims=True)
    p = jnp.exp(s)
    p = p * pl.reciprocal(jnp.sum(p, axis=-1, keepdims=True), approx=True)

    ctx = jnp.einsum('hqk,hkd->hqd', p, v3,
                     preferred_element_type=jnp.float32)    # (H, S, HD)
    attn = jnp.swapaxes(ctx, 0, 1).reshape(S, D)            # merge heads -> (S, D)

    attn = jnp.dot(attn.astype(jnp.bfloat16), w_aproj[...],
                   preferred_element_type=jnp.float32) + b_aproj[...]
    # attn_dropout / resid_dropout are identity in eval mode.

    h1 = x + attn                                           # residual 1

    # ---- ln_2 + MLP ----
    h2 = _layer_norm(h1, ln2_g[...], ln2_b[...])
    ff = jnp.dot(h2.astype(jnp.bfloat16), w_fc[...],
                 preferred_element_type=jnp.float32) + b_fc[...]      # (S, I)
    ff = _gelu_new(ff)
    # TODO(synk): primer_square branch omitted (config.primer_square=False).
    ff = jnp.dot(ff.astype(jnp.bfloat16), w_mproj[...],
                 preferred_element_type=jnp.float32) + b_mproj[...]   # (S, D)

    out_ref[...] = h1 + ff                                  # residual 2


def prepare_params(params):
    """One-time setup: cast the four weight matrices to bf16 for the MXU.

    Done once at parameter-setup time so the per-call path does not re-read
    f32 weights from HBM and write bf16 copies on every invocation.
    Biases / LayerNorm params stay f32.
    """
    (ln1_g, ln1_b, w_attn, b_attn, w_aproj, b_aproj,
     ln2_g, ln2_b, w_fc, b_fc, w_mproj, b_mproj) = params
    return (ln1_g, ln1_b,
            w_attn.astype(jnp.bfloat16), b_attn,
            w_aproj.astype(jnp.bfloat16), b_aproj,
            ln2_g, ln2_b,
            w_fc.astype(jnp.bfloat16), b_fc,
            w_mproj.astype(jnp.bfloat16), b_mproj)


def gpt2_block_flex(x, kparams):
    """x: (B, S, D) f32. kparams: output of prepare_params (bf16 weights)."""
    weight_spec = lambda shp: pl.BlockSpec(shp, lambda b, _s=shp: (0,) * len(_s))

    in_specs = [
        pl.BlockSpec((None, S, D), lambda b: (b, 0, 0)),   # x, one batch elem per step
        weight_spec((1, D)), weight_spec((1, D)),          # ln_1 gamma/beta
        weight_spec((D, 3 * D)), weight_spec((1, 3 * D)),  # c_attn
        weight_spec((D, D)), weight_spec((1, D)),          # attn c_proj
        weight_spec((1, D)), weight_spec((1, D)),          # ln_2 gamma/beta
        weight_spec((D, I)), weight_spec((1, I)),          # c_fc
        weight_spec((I, D)), weight_spec((1, D)),          # mlp c_proj
    ]
    out_spec = pl.BlockSpec((None, S, D), lambda b: (b, 0, 0))

    flops = B * (2 * S * D * (3 * D)            # c_attn
                 + 2 * 2 * H * S * S * HD       # scores + context
                 + 2 * S * D * D                # attn c_proj
                 + 2 * S * D * I + 2 * S * I * D)   # MLP
    transcendentals = B * (S * I + H * S * S + 4 * S)   # tanh + exp + rsqrt/recip
    bytes_accessed = (2 * B * S * D * 4
                      + 2 * (D * 3 * D + D * D + D * I + I * D)   # bf16 weights
                      + 4 * (3 * D + D + I + D + 4 * D))          # f32 bias/LN

    return pl.pallas_call(
        gpt2_block_kernel,
        out_shape=jax.ShapeDtypeStruct((B, S, D), jnp.float32),
        grid=(B,),
        in_specs=in_specs,
        out_specs=out_spec,
        compiler_params=pltpu.CompilerParams(
            dimension_semantics=("parallel",)),
        cost_estimate=pl.CostEstimate(flops=flops,
                                      transcendentals=transcendentals,
                                      bytes_accessed=bytes_accessed),
    )(x, *kparams)


# ---------------- pure-JAX reference (f32, matches the PyTorch module) -------
def gpt2_block_ref(x, params):
    (ln1_g, ln1_b, w_attn, b_attn, w_aproj, b_aproj,
     ln2_g, ln2_b, w_fc, b_fc, w_mproj, b_mproj) = params
    h = _layer_norm(x, ln1_g[0], ln1_b[0])
    qkv = h @ w_attn + b_attn[0]
    q, k, v = jnp.split(qkv, 3, axis=-1)
    sh = lambda t: t.reshape(B, S, H, HD).transpose(0, 2, 1, 3)   # (B,H,S,HD)
    qh, kh, vh = sh(q), sh(k), sh(v)
    s = jnp.einsum('bhqd,bhkd->bhqk', qh, kh) / math.sqrt(float(HD))
    causal = jnp.tril(jnp.ones((S, S), dtype=bool))
    s = jnp.where(causal[None, None], s, MASK_VALUE)
    p = jax.nn.softmax(s, axis=-1)
    a = jnp.einsum('bhqk,bhkd->bhqd', p, vh)
    a = a.transpose(0, 2, 1, 3).reshape(B, S, D)
    a = a @ w_aproj + b_aproj[0]
    h1 = x + a
    h2 = _layer_norm(h1, ln2_g[0], ln2_b[0])
    ff = _gelu_new(h2 @ w_fc + b_fc[0]) @ w_mproj + b_mproj[0]
    return h1 + ff


if __name__ == "__main__":
    key = jax.random.PRNGKey(0)
    keys = jax.random.split(key, 16)

    x = jax.random.normal(keys[0], (B, S, D), dtype=jnp.float32)

    # deterministic synthetic parameters (GPT2-style 0.02 init, LN at 1/0)
    ln1_g = jnp.ones((1, D), jnp.float32)
    ln1_b = jnp.zeros((1, D), jnp.float32)
    ln2_g = jnp.ones((1, D), jnp.float32)
    ln2_b = jnp.zeros((1, D), jnp.float32)
    w_attn = 0.02 * jax.random.normal(keys[1], (D, 3 * D), jnp.float32)
    b_attn = 0.02 * jax.random.normal(keys[2], (1, 3 * D), jnp.float32)
    w_aproj = 0.02 * jax.random.normal(keys[3], (D, D), jnp.float32)
    b_aproj = 0.02 * jax.random.normal(keys[4], (1, D), jnp.float32)
    w_fc = 0.02 * jax.random.normal(keys[5], (D, I), jnp.float32)
    b_fc = 0.02 * jax.random.normal(keys[6], (1, I), jnp.float32)
    w_mproj = 0.02 * jax.random.normal(keys[7], (I, D), jnp.float32)
    b_mproj = 0.02 * jax.random.normal(keys[8], (1, D), jnp.float32)

    params = (ln1_g, ln1_b, w_attn, b_attn, w_aproj, b_aproj,
              ln2_g, ln2_b, w_fc, b_fc, w_mproj, b_mproj)

    # one-time bf16 weight prep (hoisted out of the per-call path)
    kparams = prepare_params(params)

    out = gpt2_block_flex(x, kparams)
    out = jax.block_until_ready(out)

    ref = gpt2_block_ref(x, params)
    err = jnp.max(jnp.abs(out - ref))
    assert out.shape == (B, S, D)
    # tolerance covers bf16 weight matmuls + approx softmax reciprocal vs f32 ref
    assert jnp.allclose(out, ref, atol=1e-2, rtol=1e-2), f"max abs err = {err}"

    print("KERNEL_OK")
</pallas_src>

<mosaic_0001>
module attributes {stable_mosaic.version = 11 : i64} {
  func.func @gpt2_block_kernel(%arg0: i32, %arg1: memref<1x8x128xf32, #tpu.memory_space<vmem>>, %arg2: memref<1x128xf32, #tpu.memory_space<vmem>>, %arg3: memref<1x128xf32, #tpu.memory_space<vmem>>, %arg4: memref<128x384xbf16, #tpu.memory_space<vmem>>, %arg5: memref<1x384xf32, #tpu.memory_space<vmem>>, %arg6: memref<128x128xbf16, #tpu.memory_space<vmem>>, %arg7: memref<1x128xf32, #tpu.memory_space<vmem>>, %arg8: memref<1x128xf32, #tpu.memory_space<vmem>>, %arg9: memref<1x128xf32, #tpu.memory_space<vmem>>, %arg10: memref<128x512xbf16, #tpu.memory_space<vmem>>, %arg11: memref<1x512xf32, #tpu.memory_space<vmem>>, %arg12: memref<512x128xbf16, #tpu.memory_space<vmem>>, %arg13: memref<1x128xf32, #tpu.memory_space<vmem>>, %arg14: memref<1x8x128xf32, #tpu.memory_space<vmem>>) attributes {dimension_semantics = [#tpu.dimension_semantics<parallel>], iteration_bounds = array<i64: 2>, scalar_prefetch = 0 : i64, scratch_operands = 0 : i64, tpu.core_type = #tpu.core_type<tc>, window_params = [{transform_indices = @transform_0, window_bounds = array<i64: 1, 8, 128>}, {pipeline_mode = #tpu.pipeline_mode<synchronous>, transform_indices = @transform_1, window_bounds = array<i64: 1, 128>}, {pipeline_mode = #tpu.pipeline_mode<synchronous>, transform_indices = @transform_2, window_bounds = array<i64: 1, 128>}, {pipeline_mode = #tpu.pipeline_mode<synchronous>, transform_indices = @transform_3, window_bounds = array<i64: 128, 384>}, {pipeline_mode = #tpu.pipeline_mode<synchronous>, transform_indices = @transform_4, window_bounds = array<i64: 1, 384>}, {pipeline_mode = #tpu.pipeline_mode<synchronous>, transform_indices = @transform_5, window_bounds = array<i64: 128, 128>}, {pipeline_mode = #tpu.pipeline_mode<synchronous>, transform_indices = @transform_6, window_bounds = array<i64: 1, 128>}, {pipeline_mode = #tpu.pipeline_mode<synchronous>, transform_indices = @transform_7, window_bounds = array<i64: 1, 128>}, {pipeline_mode = #tpu.pipeline_mode<synchronous>, transform_indices = @transform_8, window_bounds = array<i64: 1, 128>}, {pipeline_mode = #tpu.pipeline_mode<synchronous>, transform_indices = @transform_9, window_bounds = array<i64: 128, 512>}, {pipeline_mode = #tpu.pipeline_mode<synchronous>, transform_indices = @transform_10, window_bounds = array<i64: 1, 512>}, {pipeline_mode = #tpu.pipeline_mode<synchronous>, transform_indices = @transform_11, window_bounds = array<i64: 512, 128>}, {pipeline_mode = #tpu.pipeline_mode<synchronous>, transform_indices = @transform_12, window_bounds = array<i64: 1, 128>}, {transform_indices = @transform_13, window_bounds = array<i64: 1, 8, 128>}]} {
    %c0 = arith.constant 0 : index
    %c0_0 = arith.constant 0 : index
    %c0_1 = arith.constant 0 : index
    %0 = vector.load %arg1[%c0, %c0_0, %c0_1] : memref<1x8x128xf32, #tpu.memory_space<vmem>>, vector<1x8x128xf32>
    %1 = vector.shape_cast %0 : vector<1x8x128xf32> to vector<8x128xf32>
    %c0_2 = arith.constant 0 : index
    %c0_3 = arith.constant 0 : index
    %2 = vector.load %arg2[%c0_2, %c0_3] : memref<1x128xf32, #tpu.memory_space<vmem>>, vector<1x128xf32>
    %c0_4 = arith.constant 0 : index
    %c0_5 = arith.constant 0 : index
    %3 = vector.load %arg3[%c0_4, %c0_5] : memref<1x128xf32, #tpu.memory_space<vmem>>, vector<1x128xf32>
    %cst = arith.constant dense<0.000000e+00> : vector<8xf32>
    %4 = vector.multi_reduction <add>, %1, %cst [1] : vector<8x128xf32> to vector<8xf32>
    %5 = vector.shape_cast %4 : vector<8xf32> to vector<8x1xf32>
    %cst_6 = arith.constant 1.280000e+02 : f32
    %6 = vector.broadcast %cst_6 : f32 to vector<8x1xf32>
    %7 = arith.divf %5, %6 : vector<8x1xf32>
    %8 = vector.broadcast %7 : vector<8x1xf32> to vector<8x128xf32>
    %9 = arith.subf %1, %8 : vector<8x128xf32>
    %10 = arith.mulf %9, %9 : vector<8x128xf32>
    %cst_7 = arith.constant dense<0.000000e+00> : vector<8xf32>
    %11 = vector.multi_reduction <add>, %10, %cst_7 [1] : vector<8x128xf32> to vector<8xf32>
    %12 = vector.shape_cast %11 : vector<8xf32> to vector<8x1xf32>
    %cst_8 = arith.constant 1.280000e+02 : f32
    %13 = vector.broadcast %cst_8 : f32 to vector<8x1xf32>
    %14 = arith.divf %12, %13 : vector<8x1xf32>
    %15 = vector.broadcast %7 : vector<8x1xf32> to vector<8x128xf32>
    %16 = arith.subf %1, %15 : vector<8x128xf32>
    %cst_9 = arith.constant 9.99999974E-6 : f32
    %17 = vector.broadcast %cst_9 : f32 to vector<8x1xf32>
    %18 = arith.addf %14, %17 : vector<8x1xf32>
    %19 = math.rsqrt %18 : vector<8x1xf32>
    %20 = vector.broadcast %19 : vector<8x1xf32> to vector<8x128xf32>
    %21 = arith.mulf %16, %20 : vector<8x128xf32>
    %22 = vector.broadcast %2 : vector<1x128xf32> to vector<8x128xf32>
    %23 = arith.mulf %21, %22 : vector<8x128xf32>
    %24 = vector.broadcast %3 : vector<1x128xf32> to vector<8x128xf32>
    %25 = arith.addf %23, %24 : vector<8x128xf32>
    %26 = arith.truncf %25 : vector<8x128xf32> to vector<8x128xbf16>
    %c0_10 = arith.constant 0 : index
    %c0_11 = arith.constant 0 : index
    %27 = vector.load %arg4[%c0_10, %c0_11] : memref<128x384xbf16, #tpu.memory_space<vmem>>, vector<128x384xbf16>
    %cst_12 = arith.constant dense<0.000000e+00> : vector<8x384xf32>
    %28 = tpu.matmul %26, %27, %cst_12 {dimension_numbers = #tpu.dot_dimension_numbers<[1], [0], [0], [1], [0, 0, 1, 1], [], []>} : vector<8x128xbf16>, vector<128x384xbf16>, vector<8x384xf32> -> vector<8x384xf32>
    %c0_13 = arith.constant 0 : index
    %c0_14 = arith.constant 0 : index
    %29 = vector.load %arg5[%c0_13, %c0_14] : memref<1x384xf32, #tpu.memory_space<vmem>>, vector<1x384xf32>
    %30 = vector.broadcast %29 : vector<1x384xf32> to vector<8x384xf32>
    %31 = arith.addf %28, %30 : vector<8x384xf32>
    %32 = vector.extract_strided_slice %31 {offsets = [0, 0], sizes = [8, 128], strides = [1, 1]} : vector<8x384xf32> to vector<8x128xf32>
    %cst_15 = arith.constant 0.176776692 : f32
    %33 = vector.broadcast %cst_15 : f32 to vector<8x128xf32>
    %34 = arith.mulf %32, %33 : vector<8x128xf32>
    %35 = vector.extract_strided_slice %31 {offsets = [0, 128], sizes = [8, 128], strides = [1, 1]} : vector<8x384xf32> to vector<8x128xf32>
    %36 = vector.extract_strided_slice %31 {offsets = [0, 256], sizes = [8, 128], strides = [1, 1]} : vector<8x384xf32> to vector<8x128xf32>
    %37 = vector.shape_cast %34 : vector<8x128xf32> to vector<8x4x32xf32>
    %38 = tpu.transpose %37, [1, 0, 2] : vector<8x4x32xf32> -> vector<4x8x32xf32>
    %39 = vector.shape_cast %35 : vector<8x128xf32> to vector<8x4x32xf32>
    %40 = tpu.transpose %39, [1, 0, 2] : vector<8x4x32xf32> -> vector<4x8x32xf32>
    %41 = vector.shape_cast %36 : vector<8x128xf32> to vector<8x4x32xf32>
    %42 = tpu.transpose %41, [1, 0, 2] : vector<8x4x32xf32> -> vector<4x8x32xf32>
    "tpu.trace_start"() <{level = 10 : i32, message = "hqd,hkd->hqk"}> : () -> ()
    %cst_16 = arith.constant dense<0.000000e+00> : vector<4x8x8xf32>
    %43 = tpu.matmul %38, %40, %cst_16 {dimension_numbers = #tpu.dot_dimension_numbers<[2], [2], [1], [1], [0, 0, 0, 1, 1, 1], [0], [0]>} : vector<4x8x32xf32>, vector<4x8x32xf32>, vector<4x8x8xf32> -> vector<4x8x8xf32>
    "tpu.trace_stop"() : () -> ()
    %44 = tpu.iota {dimensions = array<i32: 0>} : vector<8x8xi32>
    %45 = tpu.iota {dimensions = array<i32: 1>} : vector<8x8xi32>
    %46 = arith.cmpi sle, %45, %44 : vector<8x8xi32>
    %47 = vector.shape_cast %46 : vector<8x8xi1> to vector<1x8x8xi1>
    %cst_17 = arith.constant -1.000000e+04 : f32
    %48 = vector.shape_cast %47 : vector<1x8x8xi1> to vector<1x8x8xi1>
    %49 = vector.broadcast %48 : vector<1x8x8xi1> to vector<4x8x8xi1>
    %50 = vector.broadcast %cst_17 : f32 to vector<4x8x8xf32>
    %51 = arith.select %49, %43, %50 : vector<4x8x8xi1>, vector<4x8x8xf32>
    %cst_18 = arith.constant dense<0xFF800000> : vector<4x8xf32>
    %52 = vector.multi_reduction <maximumf>, %51, %cst_18 [2] : vector<4x8x8xf32> to vector<4x8xf32>
    %53 = vector.shape_cast %52 : vector<4x8xf32> to vector<4x8x1xf32>
    %54 = vector.broadcast %53 : vector<4x8x1xf32> to vector<4x8x8xf32>
    %55 = arith.subf %51, %54 : vector<4x8x8xf32>
    %56 = math.exp %55 : vector<4x8x8xf32>
    %cst_19 = arith.constant dense<0.000000e+00> : vector<4x8xf32>
    %57 = vector.multi_reduction <add>, %56, %cst_19 [2] : vector<4x8x8xf32> to vector<4x8xf32>
    %58 = vector.shape_cast %57 : vector<4x8xf32> to vector<4x8x1xf32>
    %59 = tpu.reciprocal %58 {approx = true} : vector<4x8x1xf32> -> vector<4x8x1xf32>
    %60 = vector.broadcast %59 : vector<4x8x1xf32> to vector<4x8x8xf32>
    %61 = arith.mulf %56, %60 : vector<4x8x8xf32>
    "tpu.trace_start"() <{level = 10 : i32, message = "hqk,hkd->hqd"}> : () -> ()
    %cst_20 = arith.constant dense<0.000000e+00> : vector<4x8x32xf32>
    %62 = tpu.matmul %61, %42, %cst_20 {dimension_numbers = #tpu.dot_dimension_numbers<[2], [1], [1], [2], [0, 0, 0, 1, 1, 2], [0], [0]>} : vector<4x8x8xf32>, vector<4x8x32xf32>, vector<4x8x32xf32> -> vector<4x8x32xf32>
    "tpu.trace_stop"() : () -> ()
    %63 = tpu.transpose %62, [1, 0, 2] : vector<4x8x32xf32> -> vector<8x4x32xf32>
    %64 = vector.shape_cast %63 : vector<8x4x32xf32> to vector<8x128xf32>
    %65 = arith.truncf %64 : vector<8x128xf32> to vector<8x128xbf16>
    %c0_21 = arith.constant 0 : index
    %c0_22 = arith.constant 0 : index
    %66 = vector.load %arg6[%c0_21, %c0_22] : memref<128x128xbf16, #tpu.memory_space<vmem>>, vector<128x128xbf16>
    %cst_23 = arith.constant dense<0.000000e+00> : vector<8x128xf32>
    %67 = tpu.matmul %65, %66, %cst_23 {dimension_numbers = #tpu.dot_dimension_numbers<[1], [0], [0], [1], [0, 0, 1, 1], [], []>} : vector<8x128xbf16>, vector<128x128xbf16>, vector<8x128xf32> -> vector<8x128xf32>
    %c0_24 = arith.constant 0 : index
    %c0_25 = arith.constant 0 : index
    %68 = vector.load %arg7[%c0_24, %c0_25] : memref<1x128xf32, #tpu.memory_space<vmem>>, vector<1x128xf32>
    %69 = vector.broadcast %68 : vector<1x128xf32> to vector<8x128xf32>
    %70 = arith.addf %67, %69 : vector<8x128xf32>
    %71 = arith.addf %1, %70 : vector<8x128xf32>
    %c0_26 = arith.constant 0 : index
    %c0_27 = arith.constant 0 : index
    %72 = vector.load %arg8[%c0_26, %c0_27] : memref<1x128xf32, #tpu.memory_space<vmem>>, vector<1x128xf32>
    %c0_28 = arith.constant 0 : index
    %c0_29 = arith.constant 0 : index
    %73 = vector.load %arg9[%c0_28, %c0_29] : memref<1x128xf32, #tpu.memory_space<vmem>>, vector<1x128xf32>
    %cst_30 = arith.constant dense<0.000000e+00> : vector<8xf32>
    %74 = vector.multi_reduction <add>, %71, %cst_30 [1] : vector<8x128xf32> to vector<8xf32>
    %75 = vector.shape_cast %74 : vector<8xf32> to vector<8x1xf32>
    %cst_31 = arith.constant 1.280000e+02 : f32
    %76 = vector.broadcast %cst_31 : f32 to vector<8x1xf32>
    %77 = arith.divf %75, %76 : vector<8x1xf32>
    %78 = vector.broadcast %77 : vector<8x1xf32> to vector<8x128xf32>
    %79 = arith.subf %71, %78 : vector<8x128xf32>
    %80 = arith.mulf %79, %79 : vector<8x128xf32>
    %cst_32 = arith.constant dense<0.000000e+00> : vector<8xf32>
    %81 = vector.multi_reduction <add>, %80, %cst_32 [1] : vector<8x128xf32> to vector<8xf32>
    %82 = vector.shape_cast %81 : vector<8xf32> to vector<8x1xf32>
    %cst_33 = arith.constant 1.280000e+02 : f32
    %83 = vector.broadcast %cst_33 : f32 to vector<8x1xf32>
    %84 = arith.divf %82, %83 : vector<8x1xf32>
    %85 = vector.broadcast %77 : vector<8x1xf32> to vector<8x128xf32>
    %86 = arith.subf %71, %85 : vector<8x128xf32>
    %cst_34 = arith.constant 9.99999974E-6 : f32
    %87 = vector.broadcast %cst_34 : f32 to vector<8x1xf32>
    %88 = arith.addf %84, %87 : vector<8x1xf32>
    %89 = math.rsqrt %88 : vector<8x1xf32>
    %90 = vector.broadcast %89 : vector<8x1xf32> to vector<8x128xf32>
    %91 = arith.mulf %86, %90 : vector<8x128xf32>
    %92 = vector.broadcast %72 : vector<1x128xf32> to vector<8x128xf32>
    %93 = arith.mulf %91, %92 : vector<8x128xf32>
    %94 = vector.broadcast %73 : vector<1x128xf32> to vector<8x128xf32>
    %95 = arith.addf %93, %94 : vector<8x128xf32>
    %96 = arith.truncf %95 : vector<8x128xf32> to vector<8x128xbf16>
    %c0_35 = arith.constant 0 : index
    %c0_36 = arith.constant 0 : index
    %97 = vector.load %arg10[%c0_35, %c0_36] : memref<128x512xbf16, #tpu.memory_space<vmem>>, vector<128x512xbf16>
    %cst_37 = arith.constant dense<0.000000e+00> : vector<8x512xf32>
    %98 = tpu.matmul %96, %97, %cst_37 {dimension_numbers = #tpu.dot_dimension_numbers<[1], [0], [0], [1], [0, 0, 1, 1], [], []>} : vector<8x128xbf16>, vector<128x512xbf16>, vector<8x512xf32> -> vector<8x512xf32>
    %c0_38 = arith.constant 0 : index
    %c0_39 = arith.constant 0 : index
    %99 = vector.load %arg11[%c0_38, %c0_39] : memref<1x512xf32, #tpu.memory_space<vmem>>, vector<1x512xf32>
    %100 = vector.broadcast %99 : vector<1x512xf32> to vector<8x512xf32>
    %101 = arith.addf %98, %100 : vector<8x512xf32>
    %cst_40 = arith.constant 5.000000e-01 : f32
    %102 = vector.broadcast %cst_40 : f32 to vector<8x512xf32>
    %103 = arith.mulf %102, %101 : vector<8x512xf32>
    %cst_41 = arith.constant 4.471500e-02 : f32
    %104 = vector.broadcast %cst_41 : f32 to vector<8x512xf32>
    %105 = arith.mulf %104, %101 : vector<8x512xf32>
    %106 = arith.mulf %105, %101 : vector<8x512xf32>
    %107 = arith.mulf %106, %101 : vector<8x512xf32>
    %108 = arith.addf %101, %107 : vector<8x512xf32>
    %cst_42 = arith.constant 0.797884583 : f32
    %109 = vector.broadcast %cst_42 : f32 to vector<8x512xf32>
    %110 = arith.mulf %109, %108 : vector<8x512xf32>
    %111 = math.tanh %110 : vector<8x512xf32>
    %cst_43 = arith.constant 1.000000e+00 : f32
    %112 = vector.broadcast %cst_43 : f32 to vector<8x512xf32>
    %113 = arith.addf %112, %111 : vector<8x512xf32>
    %114 = arith.mulf %103, %113 : vector<8x512xf32>
    %115 = arith.truncf %114 : vector<8x512xf32> to vector<8x512xbf16>
    %c0_44 = arith.constant 0 : index
    %c0_45 = arith.constant 0 : index
    %116 = vector.load %arg12[%c0_44, %c0_45] : memref<512x128xbf16, #tpu.memory_space<vmem>>, vector<512x128xbf16>
    %cst_46 = arith.constant dense<0.000000e+00> : vector<8x128xf32>
    %117 = tpu.matmul %115, %116, %cst_46 {dimension_numbers = #tpu.dot_dimension_numbers<[1], [0], [0], [1], [0, 0, 1, 1], [], []>} : vector<8x512xbf16>, vector<512x128xbf16>, vector<8x128xf32> -> vector<8x128xf32>
    %c0_47 = arith.constant 0 : index
    %c0_48 = arith.constant 0 : index
    %118 = vector.load %arg13[%c0_47, %c0_48] : memref<1x128xf32, #tpu.memory_space<vmem>>, vector<1x128xf32>
    %119 = vector.broadcast %118 : vector<1x128xf32> to vector<8x128xf32>
    %120 = arith.addf %117, %119 : vector<8x128xf32>
    %121 = arith.addf %71, %120 : vector<8x128xf32>
    %c0_49 = arith.constant 0 : index
    %c0_50 = arith.constant 0 : index
    %c0_51 = arith.constant 0 : index
    %122 = vector.load %arg14[%c0_49, %c0_50, %c0_51] : memref<1x8x128xf32, #tpu.memory_space<vmem>>, vector<1x8x128xf32>
    %123 = vector.shape_cast %122 : vector<1x8x128xf32> to vector<8x128xf32>
    %124 = vector.shape_cast %121 : vector<8x128xf32> to vector<1x8x128xf32>
    tpu.vector_store %arg14[%c0_49, %c0_50, %c0_51], %124 {strides = array<i32>} : memref<1x8x128xf32, #tpu.memory_space<vmem>>, vector<1x8x128xf32>,
    return
  }
  func.func @transform_0(%arg0: i32) -> (i32, i32, i32) {
    %c0_i32 = arith.constant 0 : i32
    %c0_i32_0 = arith.constant 0 : i32
    %c0_i32_1 = arith.constant 0 : i32
    return %arg0, %c0_i32, %c0_i32_0 : i32, i32, i32
  }
  func.func @transform_1(%arg0: i32) -> (i32, i32) {
    %c0_i32 = arith.constant 0 : i32
    %c0_i32_0 = arith.constant 0 : i32
    %c0_i32_1 = arith.constant 0 : i32
    return %c0_i32, %c0_i32_0 : i32, i32
  }
  func.func @transform_2(%arg0: i32) -> (i32, i32) {
    %c0_i32 = arith.constant 0 : i32
    %c0_i32_0 = arith.constant 0 : i32
    %c0_i32_1 = arith.constant 0 : i32
    return %c0_i32, %c0_i32_0 : i32, i32
  }
  func.func @transform_3(%arg0: i32) -> (i32, i32) {
    %c0_i32 = arith.constant 0 : i32
    %c0_i32_0 = arith.constant 0 : i32
    %c0_i32_1 = arith.constant 0 : i32
    return %c0_i32, %c0_i32_0 : i32, i32
  }
  func.func @transform_4(%arg0: i32) -> (i32, i32) {
    %c0_i32 = arith.constant 0 : i32
    %c0_i32_0 = arith.constant 0 : i32
    %c0_i32_1 = arith.constant 0 : i32
    return %c0_i32, %c0_i32_0 : i32, i32
  }
  func.func @transform_5(%arg0: i32) -> (i32, i32) {
    %c0_i32 = arith.constant 0 : i32
    %c0_i32_0 = arith.constant 0 : i32
    %c0_i32_1 = arith.constant 0 : i32
    return %c0_i32, %c0_i32_0 : i32, i32
  }
  func.func @transform_6(%arg0: i32) -> (i32, i32) {
    %c0_i32 = arith.constant 0 : i32
    %c0_i32_0 = arith.constant 0 : i32
    %c0_i32_1 = arith.constant 0 : i32
    return %c0_i32, %c0_i32_0 : i32, i32
  }
  func.func @transform_7(%arg0: i32) -> (i32, i32) {
    %c0_i32 = arith.constant 0 : i32
    %c0_i32_0 = arith.constant 0 : i32
    %c0_i32_1 = arith.constant 0 : i32
    return %c0_i32, %c0_i32_0 : i32, i32
  }
  func.func @transform_8(%arg0: i32) -> (i32, i32) {
    %c0_i32 = arith.constant 0 : i32
    %c0_i32_0 = arith.constant 0 : i32
    %c0_i32_1 = arith.constant 0 : i32
    return %c0_i32, %c0_i32_0 : i32, i32
  }
  func.func @transform_9(%arg0: i32) -> (i32, i32) {
    %c0_i32 = arith.constant 0 : i32
    %c0_i32_0 = arith.constant 0 : i32
    %c0_i32_1 = arith.constant 0 : i32
    return %c0_i32, %c0_i32_0 : i32, i32
  }
  func.func @transform_10(%arg0: i32) -> (i32, i32) {
    %c0_i32 = arith.constant 0 : i32
    %c0_i32_0 = arith.constant 0 : i32
    %c0_i32_1 = arith.constant 0 : i32
    return %c0_i32, %c0_i32_0 : i32, i32
  }
  func.func @transform_11(%arg0: i32) -> (i32, i32) {
    %c0_i32 = arith.constant 0 : i32
    %c0_i32_0 = arith.constant 0 : i32
    %c0_i32_1 = arith.constant 0 : i32
    return %c0_i32, %c0_i32_0 : i32, i32
  }
  func.func @transform_12(%arg0: i32) -> (i32, i32) {
    %c0_i32 = arith.constant 0 : i32
    %c0_i32_0 = arith.constant 0 : i32
    %c0_i32_1 = arith.constant 0 : i32
    return %c0_i32, %c0_i32_0 : i32, i32
  }
  func.func @transform_13(%arg0: i32) -> (i32, i32, i32) {
    %c0_i32 = arith.constant 0 : i32
    %c0_i32_0 = arith.constant 0 : i32
    %c0_i32_1 = arith.constant 0 : i32
    return %arg0, %c0_i32, %c0_i32_0 : i32, i32, i32
  }
}

</mosaic_0001>

<llo_original>
// kernel: tpu_custom_call.1
$region0: #{tpu_custom_call.1}
  #allocation0 [shape = 'u32[]', space=smem, size = 0x4, offset = 0x4, fixed_abs, tag = 'smem constant byte address 0x4 - core index']
  #allocation1 [shape = 'u32[144,128]{1,0:T(1,128)}', space=vmem, size = 0x12000, scoped, tag = 'internal scratch']
  %s0 = inlined_call_operand.hbm [shape: f32[2,8,128], index: 0, kind: input, shape index: {}]
  %s1 = inlined_call_operand.hbm [shape: f32[1,128], index: 1, kind: input, shape index: {}]
  %s2 = inlined_call_operand.hbm [shape: f32[1,128], index: 2, kind: input, shape index: {}]
  %s3 = inlined_call_operand.hbm [shape: bf16[128,384], index: 3, kind: input, shape index: {}]
  %s4 = inlined_call_operand.vmem [shape: f32[1,384], index: 4, kind: input, shape index: {}]
  %s5 = inlined_call_operand.hbm [shape: bf16[128,128], index: 5, kind: input, shape index: {}]
  %s6 = inlined_call_operand.vmem [shape: f32[1,128], index: 6, kind: input, shape index: {}]
  %s7 = inlined_call_operand.vmem [shape: f32[1,128], index: 7, kind: input, shape index: {}]
  %s8 = inlined_call_operand.vmem [shape: f32[1,128], index: 8, kind: input, shape index: {}]
  %s9 = inlined_call_operand.hbm [shape: bf16[128,512], index: 9, kind: input, shape index: {}]
  %s10 = inlined_call_operand.vmem [shape: f32[1,512], index: 10, kind: input, shape index: {}]
  %s11 = inlined_call_operand.hbm [shape: bf16[512,128], index: 11, kind: input, shape index: {}]
  %s12 = inlined_call_operand.vmem [shape: f32[1,128], index: 12, kind: input, shape index: {}]
  %s13 = inlined_call_operand.hbm [shape: f32[2,8,128], index: 13, kind: output, shape index: {}]
  %s14 = sld [smem:[#allocation0]]
  $region113: #{tpu_custom_call.1} parent=0
    _
  %s16 = ssub.s32 1, %s14
  %s17 = scalar_select 0, %s16, %s14
  $region1: #{tpu_custom_call.1} parent=0
    #allocation2 [shape = 'u8[8192]{0}', space=vmem, size = 0x2000, scoped, tag = 'input window, operand 0']
    #allocation3 [shape = 's32[2]{0}', space=sflag, size = 0x8, scoped, tag = 'scoped memory for tpu_custom_call.1']
    #allocation4 [shape = 's32[2]{0}', space=sflag, size = 0x8, scoped, tag = 'scoped memory for tpu_custom_call.1']
    #allocation5 [shape = 'u8[512]{0}', space=vmem, size = 0x400, scoped, tag = 'input window, operand 1, single buffered']
    #allocation6 [shape = 's32[1]{0}', space=sflag, size = 0x4, scoped, tag = 'scoped memory for tpu_custom_call.1']
    #allocation7 [shape = 'u8[512]{0}', space=vmem, size = 0x400, scoped, tag = 'input window, operand 2, single buffered']
    #allocation8 [shape = 'u8[98304]{0}', space=vmem, size = 0x18000, scoped, tag = 'input window, operand 3, single buffered']
    #allocation9 [shape = 's32[1]{0}', space=sflag, size = 0x4, scoped, tag = 'scoped memory for tpu_custom_call.1']
    #allocation10 [shape = 'u8[32768]{0}', space=vmem, size = 0x8000, scoped, tag = 'input window, operand 5, single buffered']
    #allocation11 [shape = 'u8[131072]{0}', space=vmem, size = 0x20000, scoped, tag = 'input window, operand 9, single buffered']
    #allocation12 [shape = 's32[1]{0}', space=sflag, size = 0x4, scoped, tag = 'scoped memory for tpu_custom_call.1']
    #allocation13 [shape = 'u8[131072]{0}', space=vmem, size = 0x20000, scoped, tag = 'input window, operand 11, single buffered']
    #allocation14 [shape = 'u8[8192]{0}', space=vmem, size = 0x2000, scoped, tag = 'output window, operand 0']
    %18 = vsyncpa [#allocation3], 0
    %s19 = scalar_lea.sflag [#allocation3], 1
    %20 = vsyncpa %s19, 0
    %21 = vsyncpa [#allocation6], 0
    %22 = vsyncpa [#allocation9], 0
    %23 = vsyncpa [#allocation12], 0
    %24 = vsyncpa [#allocation4], 0
    %s25 = scalar_lea.sflag [#allocation4], 1
    %26 = vsyncpa %s25, 0
    loop: start=0, step=1, limit=4
    $region2: #{tpu_custom_call.1} parent=1 // loop_pre_header
      _
    $region3: #{tpu_custom_call.1} parent=1 // loop_header
      %s28 = sphi 0, %s32
      %p29 = scmp.ge.s32.totalorder %s28, 4
      %s38 = sphi 0, %s40
      %s41 = sphi 0, %s38
      %s42 = sphi 0, %s41
      %s58 = sphi 0, %s42
      %s62 = sphi 0, %s62
      %s64 = sphi 0, %s62
      %s65 = sphi 0, %s64
      %s79 = sphi 0, %s65
      %s83 = sphi 0, %s83
      %s85 = sphi 0, %s83
      %s86 = sphi 0, %s85
      %s100 = sphi 0, %s86
      %s104 = sphi 0, %s104
      %s106 = sphi 0, %s104
      %s107 = sphi 0, %s106
      %s121 = sphi 0, %s107
      %s125 = sphi 0, %s125
      %s127 = sphi 0, %s125
      %s128 = sphi 0, %s127
      %s142 = sphi 0, %s128
      %s146 = sphi 0, %s146
      %s148 = sphi 0, %s146
      %s149 = sphi 0, %s148
      %s163 = sphi 0, %s149
      %s167 = sphi 0, %s167
      %s169 = sphi 0, %s167
      %s170 = sphi 0, %s169
      %s184 = sphi 0, %s170
      %s188 = sphi 0, %s188
      %s190 = sphi 0, %s188
      %s191 = sphi 0, %s190
      %s205 = sphi 0, %s191
      %s209 = sphi 0, %s209
      %s211 = sphi 0, %s209
      %s212 = sphi 0, %s211
      %s226 = sphi 0, %s212
      %s230 = sphi 0, %s230
      %s232 = sphi 0, %s230
      %s233 = sphi 0, %s232
      %s247 = sphi 0, %s233
      %s251 = sphi 0, %s251
      %s253 = sphi 0, %s251
      %s254 = sphi 0, %s253
      %s268 = sphi 0, %s254
      %s272 = sphi 0, %s272
      %s274 = sphi 0, %s272
      %s275 = sphi 0, %s274
      %s289 = sphi 0, %s275
      %s293 = sphi 0, %s293
      %s295 = sphi 0, %s293
      %s296 = sphi 0, %s295
      %s310 = sphi 0, %s296
      %s316 = sphi 0, %s318
      %s319 = sphi 0, %s316
      %s320 = sphi 0, %s319
      %s336 = sphi 0, %s320
    $region4: #{tpu_custom_call.1} parent=1 // loop_header_branch
      %31 = sbr.rel (%p29) target = $region8
    $region5: #{tpu_custom_call.1} parent=1 // loop_body
      %s33 = ssub.s32 %s28, 1
      %s34 = ssub.s32 %s28, 2
      %s35 = sadd.s32 %s28, 1
      %s36 = ssub.s32 %s28, %s35
      %p37 = scmp.eq.s32.totalorder %s36, 0
      %s39 = sadd.s32 %s38, 1
      %s40 = scalar_select %p37, %s38, %s39
      %p43 = pneg %p37
      %p44 = scmp.eq.s32.totalorder %s28, 1
      %p45 = por %p43, %p44
      %p46 = scmp.ne.s32.totalorder %s38, %s41
      %p47 = scmp.eq.s32.totalorder %s28, 0
      %p48 = por %p46, %p47
      %p49 = scmp.ne.s32.totalorder %s38, %s41
      %p50 = scmp.eq.s32.totalorder %s33, 1
      %p51 = por %p49, %p50
      %p52 = scmp.ne.s32.totalorder %s41, %s42
      %p53 = scmp.eq.s32.totalorder %s33, 0
      %p54 = por %p52, %p53
      %p55 = scmp.ne.s32.totalorder %s41, %s42
      %p56 = scmp.eq.s32.totalorder %s34, 1
      %p57 = por %p55, %p56
      %p59 = scmp.ne.s32.totalorder %s42, %s58
      %p60 = scmp.eq.s32.totalorder %s34, 0
      %p61 = por %p59, %p60
      %s63 = sadd.s32 %s62, 1
      %p66 = scmp.eq.s32.totalorder %s28, 1
      %p67 = scmp.ne.s32.totalorder %s62, %s64
      %p68 = scmp.eq.s32.totalorder %s28, 0
      %p69 = por %p67, %p68
      %p70 = scmp.ne.s32.totalorder %s62, %s64
      %p71 = scmp.eq.s32.totalorder %s33, 1
      %p72 = por %p70, %p71
      %p73 = scmp.ne.s32.totalorder %s64, %s65
      %p74 = scmp.eq.s32.totalorder %s33, 0
      %p75 = por %p73, %p74
      %p76 = scmp.ne.s32.totalorder %s64, %s65
      %p77 = scmp.eq.s32.totalorder %s34, 1
      %p78 = por %p76, %p77
      %p80 = scmp.ne.s32.totalorder %s65, %s79
      %p81 = scmp.eq.s32.totalorder %s34, 0
      %p82 = por %p80, %p81
      %s84 = sadd.s32 %s83, 1
      %p87 = scmp.eq.s32.totalorder %s28, 1
      %p88 = scmp.ne.s32.totalorder %s83, %s85
      %p89 = scmp.eq.s32.totalorder %s28, 0
      %p90 = por %p88, %p89
      %p91 = scmp.ne.s32.totalorder %s83, %s85
      %p92 = scmp.eq.s32.totalorder %s33, 1
      %p93 = por %p91, %p92
      %p94 = scmp.ne.s32.totalorder %s85, %s86
      %p95 = scmp.eq.s32.totalorder %s33, 0
      %p96 = por %p94, %p95
      %p97 = scmp.ne.s32.totalorder %s85, %s86
      %p98 = scmp.eq.s32.totalorder %s34, 1
      %p99 = por %p97, %p98
      %p101 = scmp.ne.s32.totalorder %s86, %s100
      %p102 = scmp.eq.s32.totalorder %s34, 0
      %p103 = por %p101, %p102
      %s105 = sadd.s32 %s104, 1
      %p108 = scmp.eq.s32.totalorder %s28, 1
      %p109 = scmp.ne.s32.totalorder %s104, %s106
      %p110 = scmp.eq.s32.totalorder %s28, 0
      %p111 = por %p109, %p110
      %p112 = scmp.ne.s32.totalorder %s104, %s106
      %p113 = scmp.eq.s32.totalorder %s33, 1
      %p114 = por %p112, %p113
      %p115 = scmp.ne.s32.totalorder %s106, %s107
      %p116 = scmp.eq.s32.totalorder %s33, 0
      %p117 = por %p115, %p116
      %p118 = scmp.ne.s32.totalorder %s106, %s107
      %p119 = scmp.eq.s32.totalorder %s34, 1
      %p120 = por %p118, %p119
      %p122 = scmp.ne.s32.totalorder %s107, %s121
      %p123 = scmp.eq.s32.totalorder %s34, 0
      %p124 = por %p122, %p123
      %s126 = sadd.s32 %s125, 1
      %p129 = scmp.eq.s32.totalorder %s28, 1
      %p130 = scmp.ne.s32.totalorder %s125, %s127
      %p131 = scmp.eq.s32.totalorder %s28, 0
      %p132 = por %p130, %p131
      %p133 = scmp.ne.s32.totalorder %s125, %s127
      %p134 = scmp.eq.s32.totalorder %s33, 1
      %p135 = por %p133, %p134
      %p136 = scmp.ne.s32.totalorder %s127, %s128
      %p137 = scmp.eq.s32.totalorder %s33, 0
      %p138 = por %p136, %p137
      %p139 = scmp.ne.s32.totalorder %s127, %s128
      %p140 = scmp.eq.s32.totalorder %s34, 1
      %p141 = por %p139, %p140
      %p143 = scmp.ne.s32.totalorder %s128, %s142
      %p144 = scmp.eq.s32.totalorder %s34, 0
      %p145 = por %p143, %p144
      %s147 = sadd.s32 %s146, 1
      %p150 = scmp.eq.s32.totalorder %s28, 1
      %p151 = scmp.ne.s32.totalorder %s146, %s148
      %p152 = scmp.eq.s32.totalorder %s28, 0
      %p153 = por %p151, %p152
      %p154 = scmp.ne.s32.totalorder %s146, %s148
      %p155 = scmp.eq.s32.totalorder %s33, 1
      %p156 = por %p154, %p155
      %p157 = scmp.ne.s32.totalorder %s148, %s149
      %p158 = scmp.eq.s32.totalorder %s33, 0
      %p159 = por %p157, %p158
      %p160 = scmp.ne.s32.totalorder %s148, %s149
      %p161 = scmp.eq.s32.totalorder %s34, 1
      %p162 = por %p160, %p161
      %p164 = scmp.ne.s32.totalorder %s149, %s163
      %p165 = scmp.eq.s32.totalorder %s34, 0
      %p166 = por %p164, %p165
      %s168 = sadd.s32 %s167, 1
      %p171 = scmp.eq.s32.totalorder %s28, 1
      %p172 = scmp.ne.s32.totalorder %s167, %s169
      %p173 = scmp.eq.s32.totalorder %s28, 0
      %p174 = por %p172, %p173
      %p175 = scmp.ne.s32.totalorder %s167, %s169
      %p176 = scmp.eq.s32.totalorder %s33, 1
      %p177 = por %p175, %p176
      %p178 = scmp.ne.s32.totalorder %s169, %s170
      %p179 = scmp.eq.s32.totalorder %s33, 0
      %p180 = por %p178, %p179
      %p181 = scmp.ne.s32.totalorder %s169, %s170
      %p182 = scmp.eq.s32.totalorder %s34, 1
      %p183 = por %p181, %p182
      %p185 = scmp.ne.s32.totalorder %s170, %s184
      %p186 = scmp.eq.s32.totalorder %s34, 0
      %p187 = por %p185, %p186
      %s189 = sadd.s32 %s188, 1
      %p192 = scmp.eq.s32.totalorder %s28, 1
      %p193 = scmp.ne.s32.totalorder %s188, %s190
      %p194 = scmp.eq.s32.totalorder %s28, 0
      %p195 = por %p193, %p194
      %p196 = scmp.ne.s32.totalorder %s188, %s190
      %p197 = scmp.eq.s32.totalorder %s33, 1
      %p198 = por %p196, %p197
      %p199 = scmp.ne.s32.totalorder %s190, %s191
      %p200 = scmp.eq.s32.totalorder %s33, 0
      %p201 = por %p199, %p200
      %p202 = scmp.ne.s32.totalorder %s190, %s191
      %p203 = scmp.eq.s32.totalorder %s34, 1
      %p204 = por %p202, %p203
      %p206 = scmp.ne.s32.totalorder %s191, %s205
      %p207 = scmp.eq.s32.totalorder %s34, 0
      %p208 = por %p206, %p207
      %s210 = sadd.s32 %s209, 1
      %p213 = scmp.eq.s32.totalorder %s28, 1
      %p214 = scmp.ne.s32.totalorder %s209, %s211
      %p215 = scmp.eq.s32.totalorder %s28, 0
      %p216 = por %p214, %p215
      %p217 = scmp.ne.s32.totalorder %s209, %s211
      %p218 = scmp.eq.s32.totalorder %s33, 1
      %p219 = por %p217, %p218
      %p220 = scmp.ne.s32.totalorder %s211, %s212
      %p221 = scmp.eq.s32.totalorder %s33, 0
      %p222 = por %p220, %p221
      %p223 = scmp.ne.s32.totalorder %s211, %s212
      %p224 = scmp.eq.s32.totalorder %s34, 1
      %p225 = por %p223, %p224
      %p227 = scmp.ne.s32.totalorder %s212, %s226
      %p228 = scmp.eq.s32.totalorder %s34, 0
      %p229 = por %p227, %p228
      %s231 = sadd.s32 %s230, 1
      %p234 = scmp.eq.s32.totalorder %s28, 1
      %p235 = scmp.ne.s32.totalorder %s230, %s232
      %p236 = scmp.eq.s32.totalorder %s28, 0
      %p237 = por %p235, %p236
      %p238 = scmp.ne.s32.totalorder %s230, %s232
      %p239 = scmp.eq.s32.totalorder %s33, 1
      %p240 = por %p238, %p239
      %p241 = scmp.ne.s32.totalorder %s232, %s233
      %p242 = scmp.eq.s32.totalorder %s33, 0
      %p243 = por %p241, %p242
      %p244 = scmp.ne.s32.totalorder %s232, %s233
      %p245 = scmp.eq.s32.totalorder %s34, 1
      %p246 = por %p244, %p245
      %p248 = scmp.ne.s32.totalorder %s233, %s247
      %p249 = scmp.eq.s32.totalorder %s34, 0
      %p250 = por %p248, %p249
      %s252 = sadd.s32 %s251, 1
      %p255 = scmp.eq.s32.totalorder %s28, 1
      %p256 = scmp.ne.s32.totalorder %s251, %s253
      %p257 = scmp.eq.s32.totalorder %s28, 0
      %p258 = por %p256, %p257
      %p259 = scmp.ne.s32.totalorder %s251, %s253
      %p260 = scmp.eq.s32.totalorder %s33, 1
      %p261 = por %p259, %p260
      %p262 = scmp.ne.s32.totalorder %s253, %s254
      %p263 = scmp.eq.s32.totalorder %s33, 0
      %p264 = por %p262, %p263
      %p265 = scmp.ne.s32.totalorder %s253, %s254
      %p266 = scmp.eq.s32.totalorder %s34, 1
      %p267 = por %p265, %p266
      %p269 = scmp.ne.s32.totalorder %s254, %s268
      %p270 = scmp.eq.s32.totalorder %s34, 0
      %p271 = por %p269, %p270
      %s273 = sadd.s32 %s272, 1
      %p276 = scmp.eq.s32.totalorder %s28, 1
      %p277 = scmp.ne.s32.totalorder %s272, %s274
      %p278 = scmp.eq.s32.totalorder %s28, 0
      %p279 = por %p277, %p278
      %p280 = scmp.ne.s32.totalorder %s272, %s274
      %p281 = scmp.eq.s32.totalorder %s33, 1
      %p282 = por %p280, %p281
      %p283 = scmp.ne.s32.totalorder %s274, %s275
      %p284 = scmp.eq.s32.totalorder %s33, 0
      %p285 = por %p283, %p284
      %p286 = scmp.ne.s32.totalorder %s274, %s275
      %p287 = scmp.eq.s32.totalorder %s34, 1
      %p288 = por %p286, %p287
      %p290 = scmp.ne.s32.totalorder %s275, %s289
      %p291 = scmp.eq.s32.totalorder %s34, 0
      %p292 = por %p290, %p291
      %s294 = sadd.s32 %s293, 1
      %p297 = scmp.eq.s32.totalorder %s28, 1
      %p298 = scmp.ne.s32.totalorder %s293, %s295
      %p299 = scmp.eq.s32.totalorder %s28, 0
      %p300 = por %p298, %p299
      %p301 = scmp.ne.s32.totalorder %s293, %s295
      %p302 = scmp.eq.s32.totalorder %s33, 1
      %p303 = por %p301, %p302
      %p304 = scmp.ne.s32.totalorder %s295, %s296
      %p305 = scmp.eq.s32.totalorder %s33, 0
      %p306 = por %p304, %p305
      %p307 = scmp.ne.s32.totalorder %s295, %s296
      %p308 = scmp.eq.s32.totalorder %s34, 1
      %p309 = por %p307, %p308
      %p311 = scmp.ne.s32.totalorder %s296, %s310
      %p312 = scmp.eq.s32.totalorder %s34, 0
      %p313 = por %p311, %p312
      %s314 = ssub.s32 %s28, %s35
      %p315 = scmp.eq.s32.totalorder %s314, 0
      %s317 = sadd.s32 %s316, 1
      %s318 = scalar_select %p315, %s316, %s317
      %p321 = pneg %p315
      %p322 = scmp.eq.s32.totalorder %s28, 1
      %p323 = por %p321, %p322
      %p324 = scmp.ne.s32.totalorder %s316, %s319
      %p325 = scmp.eq.s32.totalorder %s28, 0
      %p326 = por %p324, %p325
      %p327 = scmp.ne.s32.totalorder %s316, %s319
      %p328 = scmp.eq.s32.totalorder %s33, 1
      %p329 = por %p327, %p328
      %p330 = scmp.ne.s32.totalorder %s319, %s320
      %p331 = scmp.eq.s32.totalorder %s33, 0
      %p332 = por %p330, %p331
      %p333 = scmp.ne.s32.totalorder %s319, %s320
      %p334 = scmp.eq.s32.totalorder %s34, 1
      %p335 = por %p333, %p334
      %p337 = scmp.ne.s32.totalorder %s320, %s336
      %p338 = scmp.eq.s32.totalorder %s34, 0
      %p339 = por %p337, %p338
      %p340 = scmp.le.s32.totalorder 1, %s28
      %p341 = scmp.lt.s32.totalorder %s28, 3
      %p342 = pnand %p340, %p341
      %p343 = pneg %p342
      // Predicated region
      $region9: #{tpu_custom_call.1} parent=5 // pred_check
        _
      $region10: #{tpu_custom_call.1} parent=5 // pred_check_branch
        %345 = sbr.rel (%p342) target = $region12
      $region11: #{tpu_custom_call.1} parent=5 // pred_region
        %s346 = ssub.s32 %s28, 1
        // Predicated region
        $region13: #{tpu_custom_call.1} parent=11 // pred_check
          %p347 = pneg %p75
        $region14: #{tpu_custom_call.1} parent=11 // pred_check_branch
          %349 = sbr.rel (%p347) target = $region16
        $region15: #{tpu_custom_call.1} parent=11 // pred_region
          %s351 = ssub.s32 16, 16
          %352 = vsyncadd [#allocation6], %s351
          %s354 = sshll.u32 [#allocation5], 4
          %s355 = int_to_ptr.vmem [resolvable:$true] %s354
          %357 = dma.hbm_to_vmem [thread:$0]  %s1, 16, %s355, [#allocation6]
        $region16: #{tpu_custom_call.1} parent=11 // pred_fallthru
          _
        // Predicated region
        $region17: #{tpu_custom_call.1} parent=11 // pred_check
          %p358 = pneg %p96
        $region18: #{tpu_custom_call.1} parent=11 // pred_check_branch
          %360 = sbr.rel (%p358) target = $region20
        $region19: #{tpu_custom_call.1} parent=11 // pred_region
          %s362 = ssub.s32 16, 16
          %363 = vsyncadd [#allocation6], %s362
          %s365 = sshll.u32 [#allocation7], 4
          %s366 = int_to_ptr.vmem [resolvable:$true] %s365
          %368 = dma.hbm_to_vmem [thread:$0]  %s2, 16, %s366, [#allocation6]
        $region20: #{tpu_custom_call.1} parent=11 // pred_fallthru
          _
        // Predicated region
        $region21: #{tpu_custom_call.1} parent=11 // pred_check
          %p369 = pneg %p117
        $region22: #{tpu_custom_call.1} parent=11 // pred_check_branch
          %371 = sbr.rel (%p369) target = $region24
        $region23: #{tpu_custom_call.1} parent=11 // pred_region
          %s373 = ssub.s32 3072, 3072
          %374 = vsyncadd [#allocation9], %s373
          %s375 = sshll.u32 [#allocation8], 4
          %s376 = int_to_ptr.vmem [resolvable:$true] %s375
          %381 = dma.hbm_to_vmem [thread:$0]  %s3, 3072, %s376, [#allocation9], 192, 192, 12
        $region24: #{tpu_custom_call.1} parent=11 // pred_fallthru
          _
        // Predicated region
        $region25: #{tpu_custom_call.1} parent=11 // pred_check
          %p382 = pneg %p138
        $region26: #{tpu_custom_call.1} parent=11 // pred_check_branch
          %384 = sbr.rel (%p382) target = $region28
        $region27: #{tpu_custom_call.1} parent=11 // pred_region
          _
        $region28: #{tpu_custom_call.1} parent=11 // pred_fallthru
          _
        // Predicated region
        $region29: #{tpu_custom_call.1} parent=11 // pred_check
          %p385 = pneg %p159
        $region30: #{tpu_custom_call.1} parent=11 // pred_check_branch
          %387 = sbr.rel (%p385) target = $region32
        $region31: #{tpu_custom_call.1} parent=11 // pred_region
          %s389 = ssub.s32 1024, 1024
          %390 = vsyncadd [#allocation9], %s389
          %s391 = sshll.u32 [#allocation10], 4
          %s392 = int_to_ptr.vmem [resolvable:$true] %s391
          %397 = dma.hbm_to_vmem [thread:$0]  %s5, 1024, %s392, [#allocation9], 64, 64, 4
        $region32: #{tpu_custom_call.1} parent=11 // pred_fallthru
          _
        // Predicated region
        $region33: #{tpu_custom_call.1} parent=11 // pred_check
          %p398 = pneg %p180
        $region34: #{tpu_custom_call.1} parent=11 // pred_check_branch
          %400 = sbr.rel (%p398) target = $region36
        $region35: #{tpu_custom_call.1} parent=11 // pred_region
          _
        $region36: #{tpu_custom_call.1} parent=11 // pred_fallthru
          _
        // Predicated region
        $region37: #{tpu_custom_call.1} parent=11 // pred_check
          %p401 = pneg %p201
        $region38: #{tpu_custom_call.1} parent=11 // pred_check_branch
          %403 = sbr.rel (%p401) target = $region40
        $region39: #{tpu_custom_call.1} parent=11 // pred_region
          _
        $region40: #{tpu_custom_call.1} parent=11 // pred_fallthru
          _
        // Predicated region
        $region41: #{tpu_custom_call.1} parent=11 // pred_check
          %p404 = pneg %p222
        $region42: #{tpu_custom_call.1} parent=11 // pred_check_branch
          %406 = sbr.rel (%p404) target = $region44
        $region43: #{tpu_custom_call.1} parent=11 // pred_region
          _
        $region44: #{tpu_custom_call.1} parent=11 // pred_fallthru
          _
        // Predicated region
        $region45: #{tpu_custom_call.1} parent=11 // pred_check
          %p407 = pneg %p243
        $region46: #{tpu_custom_call.1} parent=11 // pred_check_branch
          %409 = sbr.rel (%p407) target = $region48
        $region47: #{tpu_custom_call.1} parent=11 // pred_region
          %s411 = ssub.s32 4096, 4096
          %412 = vsyncadd [#allocation12], %s411
          %s413 = sshll.u32 [#allocation11], 4
          %s414 = int_to_ptr.vmem [resolvable:$true] %s413
          %419 = dma.hbm_to_vmem [thread:$0]  %s9, 4096, %s414, [#allocation12], 256, 256, 16
        $region48: #{tpu_custom_call.1} parent=11 // pred_fallthru
          _
        // Predicated region
        $region49: #{tpu_custom_call.1} parent=11 // pred_check
          %p420 = pneg %p264
        $region50: #{tpu_custom_call.1} parent=11 // pred_check_branch
          %422 = sbr.rel (%p420) target = $region52
        $region51: #{tpu_custom_call.1} parent=11 // pred_region
          _
        $region52: #{tpu_custom_call.1} parent=11 // pred_fallthru
          _
        // Predicated region
        $region53: #{tpu_custom_call.1} parent=11 // pred_check
          %p423 = pneg %p285
        $region54: #{tpu_custom_call.1} parent=11 // pred_check_branch
          %425 = sbr.rel (%p423) target = $region56
        $region55: #{tpu_custom_call.1} parent=11 // pred_region
          %s427 = ssub.s32 4096, 4096
          %428 = vsyncadd [#allocation12], %s427
          %s429 = sshll.u32 [#allocation13], 4
          %s430 = int_to_ptr.vmem [resolvable:$true] %s429
          %435 = dma.hbm_to_vmem [thread:$0]  %s11, 4096, %s430, [#allocation12], 64, 64, 4
        $region56: #{tpu_custom_call.1} parent=11 // pred_fallthru
          _
        // Predicated region
        $region57: #{tpu_custom_call.1} parent=11 // pred_check
          %p436 = pneg %p306
        $region58: #{tpu_custom_call.1} parent=11 // pred_check_branch
          %438 = sbr.rel (%p436) target = $region60
        $region59: #{tpu_custom_call.1} parent=11 // pred_region
          _
        $region60: #{tpu_custom_call.1} parent=11 // pred_fallthru
          _
      $region12: #{tpu_custom_call.1} parent=5 // pred_fallthru
        _
      %p439 = scmp.lt.s32.totalorder %s28, 2
      // Predicated region
      $region61: #{tpu_custom_call.1} parent=5 // pred_check
        %p440 = pneg %p439
      $region62: #{tpu_custom_call.1} parent=5 // pred_check_branch
        %442 = sbr.rel (%p440) target = $region64
      $region63: #{tpu_custom_call.1} parent=5 // pred_region
        // Predicated region
        $region65: #{tpu_custom_call.1} parent=63 // pred_check
          %p443 = pneg %p48
        $region66: #{tpu_custom_call.1} parent=63 // pred_check_branch
          %445 = sbr.rel (%p443) target = $region68
        $region67: #{tpu_custom_call.1} parent=63 // pred_region
          %s446 = sand.u32 %s38, 1
          %s447 = scalar_lea.sflag [#allocation3], %s446
          %s448 = sand.u32 %s38, 1
          %s449 = smul.addr %s448, 8
          %s450 = scalar_lea.vmem [#allocation2], %s449
          %s452 = ssub.s32 128, 128
          %453 = vsyncadd %s447, %s452
          %s454 = smul.addr %s28, 128
          %s455 = scalar_lea.hbm %s0, %s454
          %s457 = sshll.u32 %s450, 4
          %s458 = int_to_ptr.vmem [resolvable:$true] %s457
          %460 = dma.hbm_to_vmem [thread:$0]  %s455, 128, %s458, %s447
        $region68: #{tpu_custom_call.1} parent=63 // pred_fallthru
          _
      $region64: #{tpu_custom_call.1} parent=5 // pred_fallthru
        _
      %p461 = scmp.le.s32.totalorder 1, %s28
      %p462 = scmp.lt.s32.totalorder %s28, 3
      %p463 = pnand %p461, %p462
      %p464 = pneg %p463
      // Predicated region
      $region69: #{tpu_custom_call.1} parent=5 // pred_check
        _
      $region70: #{tpu_custom_call.1} parent=5 // pred_check_branch
        %466 = sbr.rel (%p463) target = $region72
      $region71: #{tpu_custom_call.1} parent=5 // pred_region
        %s467 = ssub.s32 %s28, 1
        %s468 = sand.u32 %s41, 1
        %s469 = scalar_lea.sflag [#allocation3], %s468
        %s470 = sand.u32 %s41, 1
        %s471 = smul.addr %s470, 8
        %s472 = scalar_lea.vmem [#allocation2], %s471
        // Predicated region
        $region73: #{tpu_custom_call.1} parent=71 // pred_check
          %p473 = pneg %p54
        $region74: #{tpu_custom_call.1} parent=71 // pred_check_branch
          %475 = sbr.rel (%p473) target = $region76
        $region75: #{tpu_custom_call.1} parent=71 // pred_region
          %476 = dma.done %s469, 128
        $region76: #{tpu_custom_call.1} parent=71 // pred_fallthru
          _
        // Predicated region
        $region77: #{tpu_custom_call.1} parent=71 // pred_check
          %p477 = pneg %p75
        $region78: #{tpu_custom_call.1} parent=71 // pred_check_branch
          %479 = sbr.rel (%p477) target = $region80
        $region79: #{tpu_custom_call.1} parent=71 // pred_region
          %480 = dma.done [#allocation6], 16
        $region80: #{tpu_custom_call.1} parent=71 // pred_fallthru
          _
        // Predicated region
        $region81: #{tpu_custom_call.1} parent=71 // pred_check
          %p481 = pneg %p96
        $region82: #{tpu_custom_call.1} parent=71 // pred_check_branch
          %483 = sbr.rel (%p481) target = $region84
        $region83: #{tpu_custom_call.1} parent=71 // pred_region
          %484 = dma.done [#allocation6], 16
        $region84: #{tpu_custom_call.1} parent=71 // pred_fallthru
          _
        // Predicated region
        $region85: #{tpu_custom_call.1} parent=71 // pred_check
          %p485 = pneg %p117
        $region86: #{tpu_custom_call.1} parent=71 // pred_check_branch
          %487 = sbr.rel (%p485) target = $region88
        $region87: #{tpu_custom_call.1} parent=71 // pred_region
          %488 = dma.done [#allocation9], 3072
        $region88: #{tpu_custom_call.1} parent=71 // pred_fallthru
          _
        // Predicated region
        $region89: #{tpu_custom_call.1} parent=71 // pred_check
          %p489 = pneg %p159
        $region90: #{tpu_custom_call.1} parent=71 // pred_check_branch
          %491 = sbr.rel (%p489) target = $region92
        $region91: #{tpu_custom_call.1} parent=71 // pred_region
          %492 = dma.done [#allocation9], 1024
        $region92: #{tpu_custom_call.1} parent=71 // pred_fallthru
          _
        // Predicated region
        $region93: #{tpu_custom_call.1} parent=71 // pred_check
          %p493 = pneg %p243
        $region94: #{tpu_custom_call.1} parent=71 // pred_check_branch
          %495 = sbr.rel (%p493) target = $region96
        $region95: #{tpu_custom_call.1} parent=71 // pred_region
          %496 = dma.done [#allocation12], 4096
        $region96: #{tpu_custom_call.1} parent=71 // pred_fallthru
          _
        // Predicated region
        $region97: #{tpu_custom_call.1} parent=71 // pred_check
          %p497 = pneg %p285
        $region98: #{tpu_custom_call.1} parent=71 // pred_check_branch
          %499 = sbr.rel (%p497) target = $region100
        $region99: #{tpu_custom_call.1} parent=71 // pred_region
          %500 = dma.done [#allocation12], 4096
        $region100: #{tpu_custom_call.1} parent=71 // pred_fallthru
          _
        %s501 = sand.u32 %s41, 1
        %s502 = scalar_lea.sflag [#allocation3], %s501
        %s503 = sand.u32 %s41, 1
        %s504 = smul.addr %s503, 8
        %s505 = scalar_lea.vmem [#allocation2], %s504
        %p506 = pneg %p54
        %p507 = pneg %p51
        %p508 = pneg %p75
        %p509 = pneg %p72
        %p510 = pneg %p96
        %p511 = pneg %p93
        %p512 = pneg %p117
        %p513 = pneg %p114
        %p514 = pneg %p138
        %p515 = pneg %p135
        %p516 = pneg %p159
        %p517 = pneg %p156
        %p518 = pneg %p180
        %p519 = pneg %p177
        %p520 = pneg %p201
        %p521 = pneg %p198
        %p522 = pneg %p222
        %p523 = pneg %p219
        %p524 = pneg %p243
        %p525 = pneg %p240
        %p526 = pneg %p264
        %p527 = pneg %p261
        %p528 = pneg %p285
        %p529 = pneg %p282
        %p530 = pneg %p306
        %p531 = pneg %p303
        %p532 = pneg %p332
        %p533 = pneg %p329
        %s534 = sand.u32 %s319, 1
        %s535 = scalar_lea.sflag [#allocation4], %s534
        %s536 = sand.u32 %s319, 1
        %s537 = smul.addr %s536, 8
        %s538 = scalar_lea.vmem [#allocation14], %s537
        %v540 = vld [vmem:[%s472] sm:$0xff]
        %v541 = vld [vmem:[#allocation5] sm:$0x1]
        %v542 = vld [vmem:[#allocation7] sm:$0x1]
        %543 = vadd.xlane.f32.xlu0 %v540
        %v544 = vpop.xlane.xlu0 %543
        %v545 = vrcp.pop 128.0
        %v546 = vmul.f32 %v544, %v545
        %v547 = vsub.f32 %v540, %v546
        %v548 = vmul.f32 %v547, %v547
        %549 = vadd.xlane.f32.xlu0 %v548
        %v550 = vpop.xlane.xlu0 %549
        %v551 = vmul.f32 %v550, %v545
        %v552 = vadd.f32 %v551, 1e-05
        %v553 = vrsqrt.pop %v552
        %v554 = vmul.f32 %v547, %v553
        %v556 = vlaneseq
        %v557 = vshrl.u32 %v556, 7
        %v558 = vsub.s32 0, %v557
        %v559 = vrot.slane %v541, %v558
        %v561 = vmul.f32 %v554, %v559
        %v563 = vlaneseq
        %v564 = vshrl.u32 %v563, 7
        %v565 = vsub.s32 0, %v564
        %v566 = vrot.slane %v542, %v565
        %v568 = vadd.f32 %v561, %v566
        %v569 = vpack.c.bf16 %v568, %v568
        %v570 = vld [vmem:[#allocation8] sm:$0xff]
        %v571 = vld [vmem:[#allocation8 + $0x8] sm:$0xf]
        %v572 = vld [vmem:[#allocation8 + $0xc] sm:$0xff]
        %v573 = vld [vmem:[#allocation8 + $0x14] sm:$0xf]
        %v574 = vld [vmem:[#allocation8 + $0x18] sm:$0xff]
        %v575 = vld [vmem:[#allocation8 + $0x20] sm:$0xf]
        %v576 = vld [vmem:[#allocation8 + $0x24] sm:$0xff]
        %v577 = vld [vmem:[#allocation8 + $0x2c] sm:$0xf]
        %v578 = vld [vmem:[#allocation8 + $0x30] sm:$0xff]
        %v579 = vld [vmem:[#allocation8 + $0x38] sm:$0xf]
        %v580 = vld [vmem:[#allocation8 + $0x3c] sm:$0xff]
        %v581 = vld [vmem:[#allocation8 + $0x44] sm:$0xf]
        %v582 = vld [vmem:[#allocation8 + $0x48] sm:$0xff]
        %v583 = vld [vmem:[#allocation8 + $0x50] sm:$0xf]
        %v584 = vld [vmem:[#allocation8 + $0x54] sm:$0xff]
        %v585 = vld [vmem:[#allocation8 + $0x5c] sm:$0xf]
        %v586 = vld [vmem:[#allocation8 + $0x60] sm:$0xff]
        %v587 = vld [vmem:[#allocation8 + $0x68] sm:$0xf]
        %v588 = vld [vmem:[#allocation8 + $0x6c] sm:$0xff]
        %v589 = vld [vmem:[#allocation8 + $0x74] sm:$0xf]
        %v590 = vld [vmem:[#allocation8 + $0x78] sm:$0xff]
        %v591 = vld [vmem:[#allocation8 + $0x80] sm:$0xf]
        %v592 = vld [vmem:[#allocation8 + $0x84] sm:$0xff]
        %v593 = vld [vmem:[#allocation8 + $0x8c] sm:$0xf]
        %v594 = vld [vmem:[#allocation8 + $0x90] sm:$0xff]
        %v595 = vld [vmem:[#allocation8 + $0x98] sm:$0xf]
        %v596 = vld [vmem:[#allocation8 + $0x9c] sm:$0xff]
        %v597 = vld [vmem:[#allocation8 + $0xa4] sm:$0xf]
        %v598 = vld [vmem:[#allocation8 + $0xa8] sm:$0xff]
        %v599 = vld [vmem:[#allocation8 + $0xb0] sm:$0xf]
        %v600 = vld [vmem:[#allocation8 + $0xb4] sm:$0xff]
        %v601 = vld [vmem:[#allocation8 + $0xbc] sm:$0xf]
        %v602 = vld [vmem:[%s4] sm:$0x7]
        %v604 = vlaneseq
        %v605 = vshrl.u32 %v604, 7
        %v606 = vsub.s32 0, %v605
        %v607 = vrot.slane %v602, %v606
        %v608 = vlaneseq
        %v609 = vshrl.u32 %v608, 7
        %v610 = vsub.s32 1, %v609
        %v611 = vrot.slane %v602, %v610
        %v612 = vlaneseq
        %v613 = vshrl.u32 %v612, 7
        %v614 = vsub.s32 2, %v613
        %v615 = vrot.slane %v602, %v614
        %v651 = vunpack.c.l.b16 %v570
        %v652 = vunpack.c.h.b16 %v570
        %v653 = vunpack.c.l.b16 %v571
        %v654 = vunpack.c.l.b16 %v572
        %v655 = vunpack.c.h.b16 %v572
        %v656 = vunpack.c.l.b16 %v573
        %v657 = vunpack.c.l.b16 %v574
        %v658 = vunpack.c.h.b16 %v574
        %v659 = vunpack.c.l.b16 %v575
        %v660 = vunpack.c.l.b16 %v576
        %v661 = vunpack.c.h.b16 %v576
        %v662 = vunpack.c.l.b16 %v577
        %v663 = vunpack.c.l.b16 %v578
        %v664 = vunpack.c.h.b16 %v578
        %v665 = vunpack.c.l.b16 %v579
        %v666 = vunpack.c.l.b16 %v580
        %v667 = vunpack.c.h.b16 %v580
        %v668 = vunpack.c.l.b16 %v581
        %v669 = vunpack.c.l.b16 %v582
        %v670 = vunpack.c.h.b16 %v582
        %v671 = vunpack.c.l.b16 %v583
        %v672 = vunpack.c.l.b16 %v584
        %v673 = vunpack.c.h.b16 %v584
        %v674 = vunpack.c.l.b16 %v585
        %v675 = vunpack.c.l.b16 %v586
        %v676 = vunpack.c.h.b16 %v586
        %v677 = vunpack.c.l.b16 %v587
        %v678 = vunpack.c.l.b16 %v588
        %v679 = vunpack.c.h.b16 %v588
        %v680 = vunpack.c.l.b16 %v589
        %v681 = vunpack.c.l.b16 %v590
        %v682 = vunpack.c.h.b16 %v590
        %v683 = vunpack.c.l.b16 %v591
        %v684 = vunpack.c.l.b16 %v592
        %v685 = vunpack.c.h.b16 %v592
        %v686 = vunpack.c.l.b16 %v593
        %v687 = vunpack.c.l.b16 %v594
        %v688 = vunpack.c.h.b16 %v594
        %v689 = vunpack.c.l.b16 %v595
        %v690 = vunpack.c.l.b16 %v596
        %v691 = vunpack.c.h.b16 %v596
        %v692 = vunpack.c.l.b16 %v597
        %v693 = vunpack.c.l.b16 %v598
        %v694 = vunpack.c.h.b16 %v598
        %v695 = vunpack.c.l.b16 %v599
        %v696 = vunpack.c.l.b16 %v600
        %v697 = vunpack.c.h.b16 %v600
        %v698 = vunpack.c.l.b16 %v601
        %v699 = vpack.c.b16 %v654, %v651
        %v700 = vpack.c.b16 %v655, %v652
        %v701 = vpack.c.b16 %v656, %v653
        %v702 = vpack.c.b16 %v660, %v657
        %v703 = vpack.c.b16 %v661, %v658
        %v704 = vpack.c.b16 %v662, %v659
        %v705 = vpack.c.b16 %v666, %v663
        %v706 = vpack.c.b16 %v667, %v664
        %v707 = vpack.c.b16 %v668, %v665
        %v708 = vpack.c.b16 %v672, %v669
        %v709 = vpack.c.b16 %v673, %v670
        %v710 = vpack.c.b16 %v674, %v671
        %v711 = vpack.c.b16 %v678, %v675
        %v712 = vpack.c.b16 %v679, %v676
        %v713 = vpack.c.b16 %v680, %v677
        %v714 = vpack.c.b16 %v684, %v681
        %v715 = vpack.c.b16 %v685, %v682
        %v716 = vpack.c.b16 %v686, %v683
        %v717 = vpack.c.b16 %v690, %v687
        %v718 = vpack.c.b16 %v691, %v688
        %v719 = vpack.c.b16 %v692, %v689
        %v720 = vpack.c.b16 %v696, %v693
        %v721 = vpack.c.b16 %v697, %v694
        %v722 = vpack.c.b16 %v698, %v695
        %747 = vmatprep.subr.bf16.mxu0 %v721
        %748 = vmatpush1.bf16.msra.mxu0 %v720
        %749 = vmatprep.subr.bf16.mxu0 %v718
        %750 = vmatpush1.bf16.msra.mxu0 %v717
        %751 = vmatprep.subr.bf16.mxu0 %v715
        %752 = vmatpush1.bf16.msra.mxu0 %v714
        %753 = vmatprep.subr.bf16.mxu0 %v712
        %754 = vmatpush1.bf16.msra.mxu0 %v711
        %755 = vmatprep.subr.bf16.mxu0 %v709
        %756 = vmatpush1.bf16.msra.mxu0 %v708
        %757 = vmatprep.subr.bf16.mxu0 %v706
        %758 = vmatpush1.bf16.msra.mxu0 %v705
        %759 = vmatprep.subr.bf16.mxu0 %v703
        %760 = vmatpush1.bf16.msra.mxu0 %v702
        %761 = vmatprep.subr.bf16.mxu0 %v700
        %762 = vmatpush1.bf16.msra.mxu0 %v699
        %763 = vmatprep.subr.bf16.mxu0 0
        %764 = vmatpush2.bf16.msra.mxu0 0
        %765 = vmatprep.subr.bf16.mxu0 0
        %766 = vmatpush2.bf16.msra.mxu0 0
        %767 = vmatprep.subr.bf16.mxu0 0
        %768 = vmatpush2.bf16.msra.mxu0 0
        %769 = vmatprep.subr.bf16.mxu0 0
        %770 = vmatpush2.bf16.msra.mxu0 0
        %771 = vmatprep.subr.bf16.mxu0 0
        %772 = vmatpush2.bf16.msra.mxu0 0
        %773 = vmatprep.subr.bf16.mxu0 0
        %774 = vmatpush2.bf16.msra.mxu0 0
        %775 = vmatprep.subr.bf16.mxu0 0
        %776 = vmatpush2.bf16.msra.mxu0 0
        %777 = vmatprep.subr.bf16.mxu0 0
        %778 = vmatpush2.bf16.msra.mxu0 0
        %779 = vmatprep.mubr.bf16.mxu0 0
        %780 = vmatmul.mubr.bf16.gmra.mxu0 %v569
        %v781 = vpop.f32.mrf.mxu0
        %v782 = vadd.f32 %v607, %v781
        %v783 = vpop.f32.mrf.mxu0
        %v784 = vadd.f32 %v611, %v783
        %v785 = vpop.f32.mrf.mxu0
        %v786 = vpop.f32.mrf.mxu0
        %787 = vdwg.mxu0
        %788 = vmatprep.subr.bf16.mxu0 0
        %789 = vmatpush1.bf16.msra.mxu0 %v722
        %790 = vmatprep.subr.bf16.mxu0 0
        %791 = vmatpush1.bf16.msra.mxu0 %v719
        %792 = vmatprep.subr.bf16.mxu0 0
        %793 = vmatpush1.bf16.msra.mxu0 %v716
        %794 = vmatprep.subr.bf16.mxu0 0
        %795 = vmatpush1.bf16.msra.mxu0 %v713
        %796 = vmatprep.subr.bf16.mxu0 0
        %797 = vmatpush1.bf16.msra.mxu0 %v710
        %798 = vmatprep.subr.bf16.mxu0 0
        %799 = vmatpush1.bf16.msra.mxu0 %v707
        %800 = vmatprep.subr.bf16.mxu0 0
        %801 = vmatpush1.bf16.msra.mxu0 %v704
        %802 = vmatprep.subr.bf16.mxu0 0
        %803 = vmatpush1.bf16.msra.mxu0 %v701
        %804 = vmatprep.subr.bf16.mxu0 0
        %805 = vmatpush2.bf16.msra.mxu0 0
        %806 = vmatprep.subr.bf16.mxu0 0
        %807 = vmatpush2.bf16.msra.mxu0 0
        %808 = vmatprep.subr.bf16.mxu0 0
        %809 = vmatpush2.bf16.msra.mxu0 0
        %810 = vmatprep.subr.bf16.mxu0 0
        %811 = vmatpush2.bf16.msra.mxu0 0
        %812 = vmatprep.subr.bf16.mxu0 0
        %813 = vmatpush2.bf16.msra.mxu0 0
        %814 = vmatprep.subr.bf16.mxu0 0
        %815 = vmatpush2.bf16.msra.mxu0 0
        %816 = vmatprep.subr.bf16.mxu0 0
        %817 = vmatpush2.bf16.msra.mxu0 0
        %818 = vmatprep.subr.bf16.mxu0 0
        %819 = vmatpush2.bf16.msra.mxu0 0
        %820 = vmatprep.mubr.bf16.mxu0 0
        %821 = vmatmul.mubr.bf16.gmra.mxu0 %v569
        %v822 = vpop.f32.mrf.mxu0
        %v823 = vadd.f32 %v615, %v822
        %v824 = vpop.f32.mrf.mxu0
        %v825 = vpop.f32.mrf.mxu0
        %v826 = vpop.f32.mrf.mxu0
        %827 = vdwg.mxu0
        %v828 = vmul.f32 %v782, 0.17677669
        %830 = vrot.lane.b32.xlu0 %v828, 96
        %v831 = vpop.permute.xlu0 %830
        %833 = vrot.lane.b32.xlu0 %v828, 64
        %v834 = vpop.permute.xlu0 %833
        %836 = vrot.lane.b32.xlu0 %v828, 32
        %v837 = vpop.permute.xlu0 %836
        %v839 = vcombine.low %v828, %v834
        %v840 = vcombine.high %v828, %v834
        %v842 = vunpack.c.l.s4 1983009808
        %v843 = vunpack.c.0.s8 %v842
        %v844 = vlaneseq
        %v845 = vshrl.u32 %v844, 7
        %v846 = vsub.s32 %v843, %v845
        %v847 = vrot.slane %v839, %v846
        %v849 = vunpack.c.l.s4 1983009808
        %v850 = vunpack.c.0.s8 %v849
        %v851 = vlaneseq
        %v852 = vshrl.u32 %v851, 7
        %v853 = vsub.s32 %v850, %v852
        %v854 = vrot.slane %v840, %v853
        %v855 = vcombine.low %v831, %v837
        %v856 = vcombine.high %v831, %v837
        %v858 = vunpack.c.l.s4 1983009808
        %v859 = vunpack.c.0.s8 %v858
        %v860 = vlaneseq
        %v861 = vshrl.u32 %v860, 7
        %v862 = vsub.s32 %v859, %v861
        %v863 = vrot.slane %v855, %v862
        %v865 = vunpack.c.l.s4 1983009808
        %v866 = vunpack.c.0.s8 %v865
        %v867 = vlaneseq
        %v868 = vshrl.u32 %v867, 7
        %v869 = vsub.s32 %v866, %v868
        %v870 = vrot.slane %v856, %v869
        %v871 = vcombine.low %v847, %v863
        %v872 = vcombine.high %v847, %v863
        %v874 = vunpack.c.l.s4 1934713408
        %v875 = vunpack.c.0.s8 %v874
        %v876 = vlaneseq
        %v877 = vshrl.u32 %v876, 7
        %v878 = vsub.s32 %v875, %v877
        %v879 = vrot.slane %v871, %v878
        %v881 = vunpack.c.l.s4 1934713408
        %v882 = vunpack.c.0.s8 %v881
        %v883 = vlaneseq
        %v884 = vshrl.u32 %v883, 7
        %v885 = vsub.s32 %v882, %v884
        %v886 = vrot.slane %v872, %v885
        %v887 = vcombine.low %v854, %v870
        %v888 = vcombine.high %v854, %v870
        %v890 = vunpack.c.l.s4 1934713408
        %v891 = vunpack.c.0.s8 %v890
        %v892 = vlaneseq
        %v893 = vshrl.u32 %v892, 7
        %v894 = vsub.s32 %v891, %v893
        %v895 = vrot.slane %v887, %v894
        %v897 = vunpack.c.l.s4 1934713408
        %v898 = vunpack.c.0.s8 %v897
        %v899 = vlaneseq
        %v900 = vshrl.u32 %v899, 7
        %v901 = vsub.s32 %v898, %v900
        %v902 = vrot.slane %v888, %v901
        %v903 = vcombine.high %v879, 0.0
        %v904 = vcombine.high %v886, 0.0
        %v905 = vcombine.high %v895, 0.0
        %v906 = vcombine.high %v902, 0.0
        %v907 = vcombine.low %v879, %v886
        %v909 = vunpack.c.l.s4 1983009808
        %v910 = vunpack.c.0.s8 %v909
        %v911 = vlaneseq
        %v912 = vshrl.u32 %v911, 7
        %v913 = vsub.s32 %v910, %v912
        %v914 = vrot.slane %v907, %v913
        %v915 = vcombine.low %v903, %v904
        %v917 = vunpack.c.l.s4 1983009808
        %v918 = vunpack.c.0.s8 %v917
        %v919 = vlaneseq
        %v920 = vshrl.u32 %v919, 7
        %v921 = vsub.s32 %v918, %v920
        %v922 = vrot.slane %v915, %v921
        %v923 = vcombine.low %v895, %v902
        %v925 = vunpack.c.l.s4 1983009808
        %v926 = vunpack.c.0.s8 %v925
        %v927 = vlaneseq
        %v928 = vshrl.u32 %v927, 7
        %v929 = vsub.s32 %v926, %v928
        %v930 = vrot.slane %v923, %v929
        %v931 = vcombine.low %v905, %v906
        %v933 = vunpack.c.l.s4 1983009808
        %v934 = vunpack.c.0.s8 %v933
        %v935 = vlaneseq
        %v936 = vshrl.u32 %v935, 7
        %v937 = vsub.s32 %v934, %v936
        %v938 = vrot.slane %v931, %v937
        %v939 = vcombine.low %v914, %v922
        %v940 = vcombine.high %v914, %v922
        %v942 = vunpack.c.l.s4 1934713408
        %v943 = vunpack.c.0.s8 %v942
        %v944 = vlaneseq
        %v945 = vshrl.u32 %v944, 7
        %v946 = vsub.s32 %v943, %v945
        %v947 = vrot.slane %v939, %v946
        %v949 = vunpack.c.l.s4 1934713408
        %v950 = vunpack.c.0.s8 %v949
        %v951 = vlaneseq
        %v952 = vshrl.u32 %v951, 7
        %v953 = vsub.s32 %v950, %v952
        %v954 = vrot.slane %v940, %v953
        %v955 = vcombine.low %v930, %v938
        %v956 = vcombine.high %v930, %v938
        %v958 = vunpack.c.l.s4 1934713408
        %v959 = vunpack.c.0.s8 %v958
        %v960 = vlaneseq
        %v961 = vshrl.u32 %v960, 7
        %v962 = vsub.s32 %v959, %v961
        %v963 = vrot.slane %v955, %v962
        %v965 = vunpack.c.l.s4 1934713408
        %v966 = vunpack.c.0.s8 %v965
        %v967 = vlaneseq
        %v968 = vshrl.u32 %v967, 7
        %v969 = vsub.s32 %v966, %v968
        %v970 = vrot.slane %v956, %v969
        %v971 = vcombine.low %v947, %v963
        %v972 = vcombine.high %v947, %v963
        %v973 = vcombine.low %v954, %v970
        %v974 = vcombine.high %v954, %v970
        %976 = vrot.lane.b32.xlu0 %v784, 96
        %v977 = vpop.permute.xlu0 %976
        %979 = vrot.lane.b32.xlu0 %v784, 64
        %v980 = vpop.permute.xlu0 %979
        %982 = vrot.lane.b32.xlu0 %v784, 32
        %v983 = vpop.permute.xlu0 %982
        %v985 = vcombine.low %v784, %v980
        %v986 = vcombine.high %v784, %v980
        %v988 = vunpack.c.l.s4 1983009808
        %v989 = vunpack.c.0.s8 %v988
        %v990 = vlaneseq
        %v991 = vshrl.u32 %v990, 7
        %v992 = vsub.s32 %v989, %v991
        %v993 = vrot.slane %v985, %v992
        %v995 = vunpack.c.l.s4 1983009808
        %v996 = vunpack.c.0.s8 %v995
        %v997 = vlaneseq
        %v998 = vshrl.u32 %v997, 7
        %v999 = vsub.s32 %v996, %v998
        %v1000 = vrot.slane %v986, %v999
        %v1001 = vcombine.low %v977, %v983
        %v1002 = vcombine.high %v977, %v983
        %v1004 = vunpack.c.l.s4 1983009808
        %v1005 = vunpack.c.0.s8 %v1004
        %v1006 = vlaneseq
        %v1007 = vshrl.u32 %v1006, 7
        %v1008 = vsub.s32 %v1005, %v1007
        %v1009 = vrot.slane %v1001, %v1008
        %v1011 = vunpack.c.l.s4 1983009808
        %v1012 = vunpack.c.0.s8 %v1011
        %v1013 = vlaneseq
        %v1014 = vshrl.u32 %v1013, 7
        %v1015 = vsub.s32 %v1012, %v1014
        %v1016 = vrot.slane %v1002, %v1015
        %v1017 = vcombine.low %v993, %v1009
        %v1018 = vcombine.high %v993, %v1009
        %v1020 = vunpack.c.l.s4 1934713408
        %v1021 = vunpack.c.0.s8 %v1020
        %v1022 = vlaneseq
        %v1023 = vshrl.u32 %v1022, 7
        %v1024 = vsub.s32 %v1021, %v1023
        %v1025 = vrot.slane %v1017, %v1024
        %v1027 = vunpack.c.l.s4 1934713408
        %v1028 = vunpack.c.0.s8 %v1027
        %v1029 = vlaneseq
        %v1030 = vshrl.u32 %v1029, 7
        %v1031 = vsub.s32 %v1028, %v1030
        %v1032 = vrot.slane %v1018, %v1031
        %v1033 = vcombine.low %v1000, %v1016
        %v1034 = vcombine.high %v1000, %v1016
        %v1036 = vunpack.c.l.s4 1934713408
        %v1037 = vunpack.c.0.s8 %v1036
        %v1038 = vlaneseq
        %v1039 = vshrl.u32 %v1038, 7
        %v1040 = vsub.s32 %v1037, %v1039
        %v1041 = vrot.slane %v1033, %v1040
        %v1043 = vunpack.c.l.s4 1934713408
        %v1044 = vunpack.c.0.s8 %v1043
        %v1045 = vlaneseq
        %v1046 = vshrl.u32 %v1045, 7
        %v1047 = vsub.s32 %v1044, %v1046
        %v1048 = vrot.slane %v1034, %v1047
        %v1049 = vcombine.high %v1025, 0.0
        %v1050 = vcombine.high %v1032, 0.0
        %v1051 = vcombine.high %v1041, 0.0
        %v1052 = vcombine.high %v1048, 0.0
        %v1053 = vcombine.low %v1025, %v1032
        %v1055 = vunpack.c.l.s4 1983009808
        %v1056 = vunpack.c.0.s8 %v1055
        %v1057 = vlaneseq
        %v1058 = vshrl.u32 %v1057, 7
        %v1059 = vsub.s32 %v1056, %v1058
        %v1060 = vrot.slane %v1053, %v1059
        %v1061 = vcombine.low %v1049, %v1050
        %v1063 = vunpack.c.l.s4 1983009808
        %v1064 = vunpack.c.0.s8 %v1063
        %v1065 = vlaneseq
        %v1066 = vshrl.u32 %v1065, 7
        %v1067 = vsub.s32 %v1064, %v1066
        %v1068 = vrot.slane %v1061, %v1067
        %v1069 = vcombine.low %v1041, %v1048
        %v1071 = vunpack.c.l.s4 1983009808
        %v1072 = vunpack.c.0.s8 %v1071
        %v1073 = vlaneseq
        %v1074 = vshrl.u32 %v1073, 7
        %v1075 = vsub.s32 %v1072, %v1074
        %v1076 = vrot.slane %v1069, %v1075
        %v1077 = vcombine.low %v1051, %v1052
        %v1079 = vunpack.c.l.s4 1983009808
        %v1080 = vunpack.c.0.s8 %v1079
        %v1081 = vlaneseq
        %v1082 = vshrl.u32 %v1081, 7
        %v1083 = vsub.s32 %v1080, %v1082
        %v1084 = vrot.slane %v1077, %v1083
        %v1085 = vcombine.low %v1060, %v1068
        %v1086 = vcombine.high %v1060, %v1068
        %v1088 = vunpack.c.l.s4 1934713408
        %v1089 = vunpack.c.0.s8 %v1088
        %v1090 = vlaneseq
        %v1091 = vshrl.u32 %v1090, 7
        %v1092 = vsub.s32 %v1089, %v1091
        %v1093 = vrot.slane %v1085, %v1092
        %v1095 = vunpack.c.l.s4 1934713408
        %v1096 = vunpack.c.0.s8 %v1095
        %v1097 = vlaneseq
        %v1098 = vshrl.u32 %v1097, 7
        %v1099 = vsub.s32 %v1096, %v1098
        %v1100 = vrot.slane %v1086, %v1099
        %v1101 = vcombine.low %v1076, %v1084
        %v1102 = vcombine.high %v1076, %v1084
        %v1104 = vunpack.c.l.s4 1934713408
        %v1105 = vunpack.c.0.s8 %v1104
        %v1106 = vlaneseq
        %v1107 = vshrl.u32 %v1106, 7
        %v1108 = vsub.s32 %v1105, %v1107
        %v1109 = vrot.slane %v1101, %v1108
        %v1111 = vunpack.c.l.s4 1934713408
        %v1112 = vunpack.c.0.s8 %v1111
        %v1113 = vlaneseq
        %v1114 = vshrl.u32 %v1113, 7
        %v1115 = vsub.s32 %v1112, %v1114
        %v1116 = vrot.slane %v1102, %v1115
        %v1117 = vcombine.low %v1093, %v1109
        %v1118 = vcombine.high %v1093, %v1109
        %v1119 = vcombine.low %v1100, %v1116
        %v1120 = vcombine.high %v1100, %v1116
        %1122 = vrot.lane.b32.xlu0 %v823, 96
        %v1123 = vpop.permute.xlu0 %1122
        %1125 = vrot.lane.b32.xlu0 %v823, 64
        %v1126 = vpop.permute.xlu0 %1125
        %1128 = vrot.lane.b32.xlu0 %v823, 32
        %v1129 = vpop.permute.xlu0 %1128
        %v1131 = vcombine.low %v823, %v1126
        %v1132 = vcombine.high %v823, %v1126
        %v1134 = vunpack.c.l.s4 1983009808
        %v1135 = vunpack.c.0.s8 %v1134
        %v1136 = vlaneseq
        %v1137 = vshrl.u32 %v1136, 7
        %v1138 = vsub.s32 %v1135, %v1137
        %v1139 = vrot.slane %v1131, %v1138
        %v1141 = vunpack.c.l.s4 1983009808
        %v1142 = vunpack.c.0.s8 %v1141
        %v1143 = vlaneseq
        %v1144 = vshrl.u32 %v1143, 7
        %v1145 = vsub.s32 %v1142, %v1144
        %v1146 = vrot.slane %v1132, %v1145
        %v1147 = vcombine.low %v1123, %v1129
        %v1148 = vcombine.high %v1123, %v1129
        %v1150 = vunpack.c.l.s4 1983009808
        %v1151 = vunpack.c.0.s8 %v1150
        %v1152 = vlaneseq
        %v1153 = vshrl.u32 %v1152, 7
        %v1154 = vsub.s32 %v1151, %v1153
        %v1155 = vrot.slane %v1147, %v1154
        %v1157 = vunpack.c.l.s4 1983009808
        %v1158 = vunpack.c.0.s8 %v1157
        %v1159 = vlaneseq
        %v1160 = vshrl.u32 %v1159, 7
        %v1161 = vsub.s32 %v1158, %v1160
        %v1162 = vrot.slane %v1148, %v1161
        %v1163 = vcombine.low %v1139, %v1155
        %v1164 = vcombine.high %v1139, %v1155
        %v1166 = vunpack.c.l.s4 1934713408
        %v1167 = vunpack.c.0.s8 %v1166
        %v1168 = vlaneseq
        %v1169 = vshrl.u32 %v1168, 7
        %v1170 = vsub.s32 %v1167, %v1169
        %v1171 = vrot.slane %v1163, %v1170
        %v1173 = vunpack.c.l.s4 1934713408
        %v1174 = vunpack.c.0.s8 %v1173
        %v1175 = vlaneseq
        %v1176 = vshrl.u32 %v1175, 7
        %v1177 = vsub.s32 %v1174, %v1176
        %v1178 = vrot.slane %v1164, %v1177
        %v1179 = vcombine.low %v1146, %v1162
        %v1180 = vcombine.high %v1146, %v1162
        %v1182 = vunpack.c.l.s4 1934713408
        %v1183 = vunpack.c.0.s8 %v1182
        %v1184 = vlaneseq
        %v1185 = vshrl.u32 %v1184, 7
        %v1186 = vsub.s32 %v1183, %v1185
        %v1187 = vrot.slane %v1179, %v1186
        %v1189 = vunpack.c.l.s4 1934713408
        %v1190 = vunpack.c.0.s8 %v1189
        %v1191 = vlaneseq
        %v1192 = vshrl.u32 %v1191, 7
        %v1193 = vsub.s32 %v1190, %v1192
        %v1194 = vrot.slane %v1180, %v1193
        %v1195 = vcombine.high %v1171, 0.0
        %v1196 = vcombine.high %v1178, 0.0
        %v1197 = vcombine.high %v1187, 0.0
        %v1198 = vcombine.high %v1194, 0.0
        %v1199 = vcombine.low %v1171, %v1178
        %v1201 = vunpack.c.l.s4 1983009808
        %v1202 = vunpack.c.0.s8 %v1201
        %v1203 = vlaneseq
        %v1204 = vshrl.u32 %v1203, 7
        %v1205 = vsub.s32 %v1202, %v1204
        %v1206 = vrot.slane %v1199, %v1205
        %v1207 = vcombine.low %v1195, %v1196
        %v1209 = vunpack.c.l.s4 1983009808
        %v1210 = vunpack.c.0.s8 %v1209
        %v1211 = vlaneseq
        %v1212 = vshrl.u32 %v1211, 7
        %v1213 = vsub.s32 %v1210, %v1212
        %v1214 = vrot.slane %v1207, %v1213
        %v1215 = vcombine.low %v1187, %v1194
        %v1217 = vunpack.c.l.s4 1983009808
        %v1218 = vunpack.c.0.s8 %v1217
        %v1219 = vlaneseq
        %v1220 = vshrl.u32 %v1219, 7
        %v1221 = vsub.s32 %v1218, %v1220
        %v1222 = vrot.slane %v1215, %v1221
        %v1223 = vcombine.low %v1197, %v1198
        %v1225 = vunpack.c.l.s4 1983009808
        %v1226 = vunpack.c.0.s8 %v1225
        %v1227 = vlaneseq
        %v1228 = vshrl.u32 %v1227, 7
        %v1229 = vsub.s32 %v1226, %v1228
        %v1230 = vrot.slane %v1223, %v1229
        %v1231 = vcombine.low %v1206, %v1214
        %v1232 = vcombine.high %v1206, %v1214
        %v1234 = vunpack.c.l.s4 1934713408
        %v1235 = vunpack.c.0.s8 %v1234
        %v1236 = vlaneseq
        %v1237 = vshrl.u32 %v1236, 7
        %v1238 = vsub.s32 %v1235, %v1237
        %v1239 = vrot.slane %v1231, %v1238
        %v1241 = vunpack.c.l.s4 1934713408
        %v1242 = vunpack.c.0.s8 %v1241
        %v1243 = vlaneseq
        %v1244 = vshrl.u32 %v1243, 7
        %v1245 = vsub.s32 %v1242, %v1244
        %v1246 = vrot.slane %v1232, %v1245
        %v1247 = vcombine.low %v1222, %v1230
        %v1248 = vcombine.high %v1222, %v1230
        %v1250 = vunpack.c.l.s4 1934713408
        %v1251 = vunpack.c.0.s8 %v1250
        %v1252 = vlaneseq
        %v1253 = vshrl.u32 %v1252, 7
        %v1254 = vsub.s32 %v1251, %v1253
        %v1255 = vrot.slane %v1247, %v1254
        %v1257 = vunpack.c.l.s4 1934713408
        %v1258 = vunpack.c.0.s8 %v1257
        %v1259 = vlaneseq
        %v1260 = vshrl.u32 %v1259, 7
        %v1261 = vsub.s32 %v1258, %v1260
        %v1262 = vrot.slane %v1248, %v1261
        %v1263 = vcombine.low %v1239, %v1255
        %v1264 = vcombine.high %v1239, %v1255
        %v1265 = vcombine.low %v1246, %v1262
        %v1266 = vcombine.high %v1246, %v1262
        %vm1267 = vcmask 261120
        %v1269 = vsel %vm1267, %v971, 0
        %v1272 = vsel %vm1267, %v1117, 0
        %1274 = vmatprep.subr.mxu0 0.0
        %1275 = vmatpush1.xpose.msra.mxu0 0.0
        %1276 = vmatprep.subr.mxu0 0.0
        %1277 = vmatpush1.xpose.msra.mxu0 0.0
        %1278 = vmatprep.subr.mxu0 0.0
        %1279 = vmatpush1.xpose.msra.mxu0 0.0
        %1280 = vmatprep.subr.mxu0 0.0
        %1281 = vmatpush1.xpose.msra.mxu0 0.0
        %1282 = vmatprep.subr.mxu0 0.0
        %1283 = vmatpush1.xpose.msra.mxu0 0.0
        %1284 = vmatprep.subr.mxu0 0.0
        %1285 = vmatpush1.xpose.msra.mxu0 0.0
        %1286 = vmatprep.subr.mxu0 0.0
        %1287 = vmatpush1.xpose.msra.mxu0 0.0
        %1288 = vmatprep.subr.mxu0 0.0
        %1289 = vmatpush1.xpose.msra.mxu0 0.0
        %1290 = vmatprep.subr.mxu0 0.0
        %1291 = vmatpush1.xpose.msra.mxu0 0.0
        %1292 = vmatprep.subr.mxu0 0.0
        %1293 = vmatpush1.xpose.msra.mxu0 0.0
        %1294 = vmatprep.subr.mxu0 0.0
        %1295 = vmatpush1.xpose.msra.mxu0 0.0
        %1296 = vmatprep.subr.mxu0 0.0
        %1297 = vmatpush1.xpose.msra.mxu0 0.0
        %1298 = vmatprep.subr.mxu0 0.0
        %1299 = vmatpush1.xpose.msra.mxu0 0.0
        %1300 = vmatprep.subr.mxu0 0.0
        %1301 = vmatpush1.xpose.msra.mxu0 0.0
        %1302 = vmatprep.subr.mxu0 0.0
        %1303 = vmatpush1.xpose.msra.mxu0 0.0
        %1304 = vmatprep.subr.mxu0 0.0
        %1305 = vmatpush1.xpose.msra.mxu0 %v1272
        %1306 = vmatprep.subr.mxu0 0.0
        %1307 = vmatpush2.xpose.msra.mxu0 0.0
        %1308 = vmatprep.subr.mxu0 0.0
        %1309 = vmatpush2.xpose.msra.mxu0 0.0
        %1310 = vmatprep.subr.mxu0 0.0
        %1311 = vmatpush2.xpose.msra.mxu0 0.0
        %1312 = vmatprep.subr.mxu0 0.0
        %1313 = vmatpush2.xpose.msra.mxu0 0.0
        %1314 = vmatprep.subr.mxu0 0.0
        %1315 = vmatpush2.xpose.msra.mxu0 0.0
        %1316 = vmatprep.subr.mxu0 0.0
        %1317 = vmatpush2.xpose.msra.mxu0 0.0
        %1318 = vmatprep.subr.mxu0 0.0
        %1319 = vmatpush2.xpose.msra.mxu0 0.0
        %1320 = vmatprep.subr.mxu0 0.0
        %1321 = vmatpush2.xpose.msra.mxu0 0.0
        %1322 = vmatprep.subr.mxu0 0.0
        %1323 = vmatpush2.xpose.msra.mxu0 0.0
        %1324 = vmatprep.subr.mxu0 0.0
        %1325 = vmatpush2.xpose.msra.mxu0 0.0
        %1326 = vmatprep.subr.mxu0 0.0
        %1327 = vmatpush2.xpose.msra.mxu0 0.0
        %1328 = vmatprep.subr.mxu0 0.0
        %1329 = vmatpush2.xpose.msra.mxu0 0.0
        %1330 = vmatprep.subr.mxu0 0.0
        %1331 = vmatpush2.xpose.msra.mxu0 0.0
        %1332 = vmatprep.subr.mxu0 0.0
        %1333 = vmatpush2.xpose.msra.mxu0 0.0
        %1334 = vmatprep.subr.mxu0 0.0
        %1335 = vmatpush2.xpose.msra.mxu0 0.0
        %1336 = vmatprep.subr.mxu0 0.0
        %1337 = vmatpush2.xpose.msra.mxu0 0.0
        %1338 = vmatprep.mubr.f32.mxu0 0.0
        %1339 = vmatmul.mubr.f32.gmra.mxu0 %v1269
        %v1340 = vpop.f32.mrf.mxu0
        %v1341 = vadd.f32 0.0, %v1340
        %v1342 = vpop.f32.mrf.mxu0
        %1343 = vdwg.mxu0
        %v1345 = vsel %vm1267, %v972, 0
        %v1348 = vsel %vm1267, %v1118, 0
        %1350 = vmatprep.subr.mxu0 0.0
        %1351 = vmatpush1.xpose.msra.mxu0 0.0
        %1352 = vmatprep.subr.mxu0 0.0
        %1353 = vmatpush1.xpose.msra.mxu0 0.0
        %1354 = vmatprep.subr.mxu0 0.0
        %1355 = vmatpush1.xpose.msra.mxu0 0.0
        %1356 = vmatprep.subr.mxu0 0.0
        %1357 = vmatpush1.xpose.msra.mxu0 0.0
        %1358 = vmatprep.subr.mxu0 0.0
        %1359 = vmatpush1.xpose.msra.mxu0 0.0
        %1360 = vmatprep.subr.mxu0 0.0
        %1361 = vmatpush1.xpose.msra.mxu0 0.0
        %1362 = vmatprep.subr.mxu0 0.0
        %1363 = vmatpush1.xpose.msra.mxu0 0.0
        %1364 = vmatprep.subr.mxu0 0.0
        %1365 = vmatpush1.xpose.msra.mxu0 0.0
        %1366 = vmatprep.subr.mxu0 0.0
        %1367 = vmatpush1.xpose.msra.mxu0 0.0
        %1368 = vmatprep.subr.mxu0 0.0
        %1369 = vmatpush1.xpose.msra.mxu0 0.0
        %1370 = vmatprep.subr.mxu0 0.0
        %1371 = vmatpush1.xpose.msra.mxu0 0.0
        %1372 = vmatprep.subr.mxu0 0.0
        %1373 = vmatpush1.xpose.msra.mxu0 0.0
        %1374 = vmatprep.subr.mxu0 0.0
        %1375 = vmatpush1.xpose.msra.mxu0 0.0
        %1376 = vmatprep.subr.mxu0 0.0
        %1377 = vmatpush1.xpose.msra.mxu0 0.0
        %1378 = vmatprep.subr.mxu0 0.0
        %1379 = vmatpush1.xpose.msra.mxu0 0.0
        %1380 = vmatprep.subr.mxu0 0.0
        %1381 = vmatpush1.xpose.msra.mxu0 %v1348
        %1382 = vmatprep.subr.mxu0 0.0
        %1383 = vmatpush2.xpose.msra.mxu0 0.0
        %1384 = vmatprep.subr.mxu0 0.0
        %1385 = vmatpush2.xpose.msra.mxu0 0.0
        %1386 = vmatprep.subr.mxu0 0.0
        %1387 = vmatpush2.xpose.msra.mxu0 0.0
        %1388 = vmatprep.subr.mxu0 0.0
        %1389 = vmatpush2.xpose.msra.mxu0 0.0
        %1390 = vmatprep.subr.mxu0 0.0
        %1391 = vmatpush2.xpose.msra.mxu0 0.0
        %1392 = vmatprep.subr.mxu0 0.0
        %1393 = vmatpush2.xpose.msra.mxu0 0.0
        %1394 = vmatprep.subr.mxu0 0.0
        %1395 = vmatpush2.xpose.msra.mxu0 0.0
        %1396 = vmatprep.subr.mxu0 0.0
        %1397 = vmatpush2.xpose.msra.mxu0 0.0
        %1398 = vmatprep.subr.mxu0 0.0
        %1399 = vmatpush2.xpose.msra.mxu0 0.0
        %1400 = vmatprep.subr.mxu0 0.0
        %1401 = vmatpush2.xpose.msra.mxu0 0.0
        %1402 = vmatprep.subr.mxu0 0.0
        %1403 = vmatpush2.xpose.msra.mxu0 0.0
        %1404 = vmatprep.subr.mxu0 0.0
        %1405 = vmatpush2.xpose.msra.mxu0 0.0
        %1406 = vmatprep.subr.mxu0 0.0
        %1407 = vmatpush2.xpose.msra.mxu0 0.0
        %1408 = vmatprep.subr.mxu0 0.0
        %1409 = vmatpush2.xpose.msra.mxu0 0.0
        %1410 = vmatprep.subr.mxu0 0.0
        %1411 = vmatpush2.xpose.msra.mxu0 0.0
        %1412 = vmatprep.subr.mxu0 0.0
        %1413 = vmatpush2.xpose.msra.mxu0 0.0
        %1414 = vmatprep.mubr.f32.mxu0 0.0
        %1415 = vmatmul.mubr.f32.gmra.mxu0 %v1345
        %v1416 = vpop.f32.mrf.mxu0
        %v1417 = vadd.f32 0.0, %v1416
        %v1418 = vpop.f32.mrf.mxu0
        %1419 = vdwg.mxu0
        %v1421 = vsel %vm1267, %v973, 0
        %v1424 = vsel %vm1267, %v1119, 0
        %1426 = vmatprep.subr.mxu0 0.0
        %1427 = vmatpush1.xpose.msra.mxu0 0.0
        %1428 = vmatprep.subr.mxu0 0.0
        %1429 = vmatpush1.xpose.msra.mxu0 0.0
        %1430 = vmatprep.subr.mxu0 0.0
        %1431 = vmatpush1.xpose.msra.mxu0 0.0
        %1432 = vmatprep.subr.mxu0 0.0
        %1433 = vmatpush1.xpose.msra.mxu0 0.0
        %1434 = vmatprep.subr.mxu0 0.0
        %1435 = vmatpush1.xpose.msra.mxu0 0.0
        %1436 = vmatprep.subr.mxu0 0.0
        %1437 = vmatpush1.xpose.msra.mxu0 0.0
        %1438 = vmatprep.subr.mxu0 0.0
        %1439 = vmatpush1.xpose.msra.mxu0 0.0
        %1440 = vmatprep.subr.mxu0 0.0
        %1441 = vmatpush1.xpose.msra.mxu0 0.0
        %1442 = vmatprep.subr.mxu0 0.0
        %1443 = vmatpush1.xpose.msra.mxu0 0.0
        %1444 = vmatprep.subr.mxu0 0.0
        %1445 = vmatpush1.xpose.msra.mxu0 0.0
        %1446 = vmatprep.subr.mxu0 0.0
        %1447 = vmatpush1.xpose.msra.mxu0 0.0
        %1448 = vmatprep.subr.mxu0 0.0
        %1449 = vmatpush1.xpose.msra.mxu0 0.0
        %1450 = vmatprep.subr.mxu0 0.0
        %1451 = vmatpush1.xpose.msra.mxu0 0.0
        %1452 = vmatprep.subr.mxu0 0.0
        %1453 = vmatpush1.xpose.msra.mxu0 0.0
        %1454 = vmatprep.subr.mxu0 0.0
        %1455 = vmatpush1.xpose.msra.mxu0 0.0
        %1456 = vmatprep.subr.mxu0 0.0
        %1457 = vmatpush1.xpose.msra.mxu0 %v1424
        %1458 = vmatprep.subr.mxu0 0.0
        %1459 = vmatpush2.xpose.msra.mxu0 0.0
        %1460 = vmatprep.subr.mxu0 0.0
        %1461 = vmatpush2.xpose.msra.mxu0 0.0
        %1462 = vmatprep.subr.mxu0 0.0
        %1463 = vmatpush2.xpose.msra.mxu0 0.0
        %1464 = vmatprep.subr.mxu0 0.0
        %1465 = vmatpush2.xpose.msra.mxu0 0.0
        %1466 = vmatprep.subr.mxu0 0.0
        %1467 = vmatpush2.xpose.msra.mxu0 0.0
        %1468 = vmatprep.subr.mxu0 0.0
        %1469 = vmatpush2.xpose.msra.mxu0 0.0
        %1470 = vmatprep.subr.mxu0 0.0
        %1471 = vmatpush2.xpose.msra.mxu0 0.0
        %1472 = vmatprep.subr.mxu0 0.0
        %1473 = vmatpush2.xpose.msra.mxu0 0.0
        %1474 = vmatprep.subr.mxu0 0.0
        %1475 = vmatpush2.xpose.msra.mxu0 0.0
        %1476 = vmatprep.subr.mxu0 0.0
        %1477 = vmatpush2.xpose.msra.mxu0 0.0
        %1478 = vmatprep.subr.mxu0 0.0
        %1479 = vmatpush2.xpose.msra.mxu0 0.0
        %1480 = vmatprep.subr.mxu0 0.0
        %1481 = vmatpush2.xpose.msra.mxu0 0.0
        %1482 = vmatprep.subr.mxu0 0.0
        %1483 = vmatpush2.xpose.msra.mxu0 0.0
        %1484 = vmatprep.subr.mxu0 0.0
        %1485 = vmatpush2.xpose.msra.mxu0 0.0
        %1486 = vmatprep.subr.mxu0 0.0
        %1487 = vmatpush2.xpose.msra.mxu0 0.0
        %1488 = vmatprep.subr.mxu0 0.0
        %1489 = vmatpush2.xpose.msra.mxu0 0.0
        %1490 = vmatprep.mubr.f32.mxu0 0.0
        %1491 = vmatmul.mubr.f32.gmra.mxu0 %v1421
        %v1492 = vpop.f32.mrf.mxu0
        %v1493 = vadd.f32 0.0, %v1492
        %v1494 = vpop.f32.mrf.mxu0
        %1495 = vdwg.mxu0
        %v1497 = vsel %vm1267, %v974, 0
        %v1500 = vsel %vm1267, %v1120, 0
        %1502 = vmatprep.subr.mxu0 0.0
        %1503 = vmatpush1.xpose.msra.mxu0 0.0
        %1504 = vmatprep.subr.mxu0 0.0
        %1505 = vmatpush1.xpose.msra.mxu0 0.0
        %1506 = vmatprep.subr.mxu0 0.0
        %1507 = vmatpush1.xpose.msra.mxu0 0.0
        %1508 = vmatprep.subr.mxu0 0.0
        %1509 = vmatpush1.xpose.msra.mxu0 0.0
        %1510 = vmatprep.subr.mxu0 0.0
        %1511 = vmatpush1.xpose.msra.mxu0 0.0
        %1512 = vmatprep.subr.mxu0 0.0
        %1513 = vmatpush1.xpose.msra.mxu0 0.0
        %1514 = vmatprep.subr.mxu0 0.0
        %1515 = vmatpush1.xpose.msra.mxu0 0.0
        %1516 = vmatprep.subr.mxu0 0.0
        %1517 = vmatpush1.xpose.msra.mxu0 0.0
        %1518 = vmatprep.subr.mxu0 0.0
        %1519 = vmatpush1.xpose.msra.mxu0 0.0
        %1520 = vmatprep.subr.mxu0 0.0
        %1521 = vmatpush1.xpose.msra.mxu0 0.0
        %1522 = vmatprep.subr.mxu0 0.0
        %1523 = vmatpush1.xpose.msra.mxu0 0.0
        %1524 = vmatprep.subr.mxu0 0.0
        %1525 = vmatpush1.xpose.msra.mxu0 0.0
        %1526 = vmatprep.subr.mxu0 0.0
        %1527 = vmatpush1.xpose.msra.mxu0 0.0
        %1528 = vmatprep.subr.mxu0 0.0
        %1529 = vmatpush1.xpose.msra.mxu0 0.0
        %1530 = vmatprep.subr.mxu0 0.0
        %1531 = vmatpush1.xpose.msra.mxu0 0.0
        %1532 = vmatprep.subr.mxu0 0.0
        %1533 = vmatpush1.xpose.msra.mxu0 %v1500
        %1534 = vmatprep.subr.mxu0 0.0
        %1535 = vmatpush2.xpose.msra.mxu0 0.0
        %1536 = vmatprep.subr.mxu0 0.0
        %1537 = vmatpush2.xpose.msra.mxu0 0.0
        %1538 = vmatprep.subr.mxu0 0.0
        %1539 = vmatpush2.xpose.msra.mxu0 0.0
        %1540 = vmatprep.subr.mxu0 0.0
        %1541 = vmatpush2.xpose.msra.mxu0 0.0
        %1542 = vmatprep.subr.mxu0 0.0
        %1543 = vmatpush2.xpose.msra.mxu0 0.0
        %1544 = vmatprep.subr.mxu0 0.0
        %1545 = vmatpush2.xpose.msra.mxu0 0.0
        %1546 = vmatprep.subr.mxu0 0.0
        %1547 = vmatpush2.xpose.msra.mxu0 0.0
        %1548 = vmatprep.subr.mxu0 0.0
        %1549 = vmatpush2.xpose.msra.mxu0 0.0
        %1550 = vmatprep.subr.mxu0 0.0
        %1551 = vmatpush2.xpose.msra.mxu0 0.0
        %1552 = vmatprep.subr.mxu0 0.0
        %1553 = vmatpush2.xpose.msra.mxu0 0.0
        %1554 = vmatprep.subr.mxu0 0.0
        %1555 = vmatpush2.xpose.msra.mxu0 0.0
        %1556 = vmatprep.subr.mxu0 0.0
        %1557 = vmatpush2.xpose.msra.mxu0 0.0
        %1558 = vmatprep.subr.mxu0 0.0
        %1559 = vmatpush2.xpose.msra.mxu0 0.0
        %1560 = vmatprep.subr.mxu0 0.0
        %1561 = vmatpush2.xpose.msra.mxu0 0.0
        %1562 = vmatprep.subr.mxu0 0.0
        %1563 = vmatpush2.xpose.msra.mxu0 0.0
        %1564 = vmatprep.subr.mxu0 0.0
        %1565 = vmatpush2.xpose.msra.mxu0 0.0
        %1566 = vmatprep.mubr.f32.mxu0 0.0
        %1567 = vmatmul.mubr.f32.gmra.mxu0 %v1497
        %v1568 = vpop.f32.mrf.mxu0
        %v1569 = vadd.f32 0.0, %v1568
        %v1570 = vpop.f32.mrf.mxu0
        %1571 = vdwg.mxu0
        %v1572 = vlaneseq
        %v1573 = vshrl.u32 %v1572, 7
        %v1574 = vlaneseq
        %v1575 = vand.u32 %v1574, 127
        %vm1576 = vcmp.le.s32.totalorder %v1575, %v1573
        %v1577 = vsel %vm1576, 1, 0
        %vm1578 = vcmp.eq.s32.totalorder %v1577, 1
        %v1579 = vsel %vm1578, %v1341, -10000.0
        %v1580 = vsel %vm1578, %v1417, -10000.0
        %v1581 = vsel %vm1578, %v1493, -10000.0
        %v1582 = vsel %vm1578, %v1569, -10000.0
        %vm1583 = vcmask 64512
        %v1584 = vsel %vm1583, %v1579, -inf
        %1585 = vmax.xlane.f32.xlu0 %v1584
        %v1586 = vpop.xlane.xlu0 %1585
        %v1587 = vsel %vm1583, %v1580, -inf
        %1588 = vmax.xlane.f32.xlu0 %v1587
        %v1589 = vpop.xlane.xlu0 %1588
        %v1590 = vsel %vm1583, %v1581, -inf
        %1591 = vmax.xlane.f32.xlu0 %v1590
        %v1592 = vpop.xlane.xlu0 %1591
        %v1593 = vsel %vm1583, %v1582, -inf
        %1594 = vmax.xlane.f32.xlu0 %v1593
        %v1595 = vpop.xlane.xlu0 %1594
        %v1596 = vsub.f32 %v1579, %v1586
        %v1597 = vsub.f32 %v1580, %v1589
        %v1598 = vsub.f32 %v1581, %v1592
        %v1599 = vsub.f32 %v1582, %v1595
        %v1600 = vmul.f32 %v1596, 1.442695
        %v1601 = vpow.pop %v1600
        %v1602 = vmul.f32 %v1597, 1.442695
        %v1603 = vpow.pop %v1602
        %v1604 = vmul.f32 %v1598, 1.442695
        %v1605 = vpow.pop %v1604
        %v1606 = vmul.f32 %v1599, 1.442695
        %v1607 = vpow.pop %v1606
        %v1608 = vsel %vm1583, %v1601, 0.0
        %1609 = vadd.xlane.f32.xlu0 %v1608
        %v1610 = vpop.xlane.xlu0 %1609
        %v1611 = vsel %vm1583, %v1603, 0.0
        %1612 = vadd.xlane.f32.xlu0 %v1611
        %v1613 = vpop.xlane.xlu0 %1612
        %v1614 = vsel %vm1583, %v1605, 0.0
        %1615 = vadd.xlane.f32.xlu0 %v1614
        %v1616 = vpop.xlane.xlu0 %1615
        %v1617 = vsel %vm1583, %v1607, 0.0
        %1618 = vadd.xlane.f32.xlu0 %v1617
        %v1619 = vpop.xlane.xlu0 %1618
        %v1620 = vrcp.pop %v1610
        %v1621 = vrcp.pop %v1613
        %v1622 = vrcp.pop %v1616
        %v1623 = vrcp.pop %v1619
        %v1624 = vmul.f32 %v1601, %v1620
        %v1625 = vmul.f32 %v1603, %v1621
        %v1626 = vmul.f32 %v1605, %v1622
        %v1627 = vmul.f32 %v1607, %v1623
        %v1629 = vsel %vm1583, %v1624, 0
        %1631 = vmatprep.subr.mxu0 0.0
        %1632 = vmatpush1.msra.mxu0 0.0
        %1633 = vmatprep.subr.mxu0 0.0
        %1634 = vmatpush1.msra.mxu0 0.0
        %1635 = vmatprep.subr.mxu0 0.0
        %1636 = vmatpush1.msra.mxu0 0.0
        %1637 = vmatprep.subr.mxu0 0.0
        %1638 = vmatpush1.msra.mxu0 0.0
        %1639 = vmatprep.subr.mxu0 0.0
        %1640 = vmatpush1.msra.mxu0 0.0
        %1641 = vmatprep.subr.mxu0 0.0
        %1642 = vmatpush1.msra.mxu0 0.0
        %1643 = vmatprep.subr.mxu0 0.0
        %1644 = vmatpush1.msra.mxu0 0.0
        %1645 = vmatprep.subr.mxu0 0.0
        %1646 = vmatpush1.msra.mxu0 0.0
        %1647 = vmatprep.subr.mxu0 0.0
        %1648 = vmatpush1.msra.mxu0 0.0
        %1649 = vmatprep.subr.mxu0 0.0
        %1650 = vmatpush1.msra.mxu0 0.0
        %1651 = vmatprep.subr.mxu0 0.0
        %1652 = vmatpush1.msra.mxu0 0.0
        %1653 = vmatprep.subr.mxu0 0.0
        %1654 = vmatpush1.msra.mxu0 0.0
        %1655 = vmatprep.subr.mxu0 0.0
        %1656 = vmatpush1.msra.mxu0 0.0
        %1657 = vmatprep.subr.mxu0 0.0
        %1658 = vmatpush1.msra.mxu0 0.0
        %1659 = vmatprep.subr.mxu0 0.0
        %1660 = vmatpush1.msra.mxu0 0.0
        %1661 = vmatprep.subr.mxu0 0.0
        %1662 = vmatpush1.msra.mxu0 %v1263
        %1663 = vmatprep.subr.mxu0 0.0
        %1664 = vmatpush2.msra.mxu0 0.0
        %1665 = vmatprep.subr.mxu0 0.0
        %1666 = vmatpush2.msra.mxu0 0.0
        %1667 = vmatprep.subr.mxu0 0.0
        %1668 = vmatpush2.msra.mxu0 0.0
        %1669 = vmatprep.subr.mxu0 0.0
        %1670 = vmatpush2.msra.mxu0 0.0
        %1671 = vmatprep.subr.mxu0 0.0
        %1672 = vmatpush2.msra.mxu0 0.0
        %1673 = vmatprep.subr.mxu0 0.0
        %1674 = vmatpush2.msra.mxu0 0.0
        %1675 = vmatprep.subr.mxu0 0.0
        %1676 = vmatpush2.msra.mxu0 0.0
        %1677 = vmatprep.subr.mxu0 0.0
        %1678 = vmatpush2.msra.mxu0 0.0
        %1679 = vmatprep.subr.mxu0 0.0
        %1680 = vmatpush2.msra.mxu0 0.0
        %1681 = vmatprep.subr.mxu0 0.0
        %1682 = vmatpush2.msra.mxu0 0.0
        %1683 = vmatprep.subr.mxu0 0.0
        %1684 = vmatpush2.msra.mxu0 0.0
        %1685 = vmatprep.subr.mxu0 0.0
        %1686 = vmatpush2.msra.mxu0 0.0
        %1687 = vmatprep.subr.mxu0 0.0
        %1688 = vmatpush2.msra.mxu0 0.0
        %1689 = vmatprep.subr.mxu0 0.0
        %1690 = vmatpush2.msra.mxu0 0.0
        %1691 = vmatprep.subr.mxu0 0.0
        %1692 = vmatpush2.msra.mxu0 0.0
        %1693 = vmatprep.subr.mxu0 0.0
        %1694 = vmatpush2.msra.mxu0 0.0
        %1695 = vmatprep.mubr.f32.mxu0 0.0
        %1696 = vmatmul.mubr.f32.gmra.mxu0 %v1629
        %v1697 = vpop.f32.mrf.mxu0
        %v1698 = vadd.f32 0.0, %v1697
        %v1699 = vpop.f32.mrf.mxu0
        %1700 = vdwg.mxu0
        %v1702 = vsel %vm1583, %v1625, 0
        %1704 = vmatprep.subr.mxu0 0.0
        %1705 = vmatpush1.msra.mxu0 0.0
        %1706 = vmatprep.subr.mxu0 0.0
        %1707 = vmatpush1.msra.mxu0 0.0
        %1708 = vmatprep.subr.mxu0 0.0
        %1709 = vmatpush1.msra.mxu0 0.0
        %1710 = vmatprep.subr.mxu0 0.0
        %1711 = vmatpush1.msra.mxu0 0.0
        %1712 = vmatprep.subr.mxu0 0.0
        %1713 = vmatpush1.msra.mxu0 0.0
        %1714 = vmatprep.subr.mxu0 0.0
        %1715 = vmatpush1.msra.mxu0 0.0
        %1716 = vmatprep.subr.mxu0 0.0
        %1717 = vmatpush1.msra.mxu0 0.0
        %1718 = vmatprep.subr.mxu0 0.0
        %1719 = vmatpush1.msra.mxu0 0.0
        %1720 = vmatprep.subr.mxu0 0.0
        %1721 = vmatpush1.msra.mxu0 0.0
        %1722 = vmatprep.subr.mxu0 0.0
        %1723 = vmatpush1.msra.mxu0 0.0
        %1724 = vmatprep.subr.mxu0 0.0
        %1725 = vmatpush1.msra.mxu0 0.0
        %1726 = vmatprep.subr.mxu0 0.0
        %1727 = vmatpush1.msra.mxu0 0.0
        %1728 = vmatprep.subr.mxu0 0.0
        %1729 = vmatpush1.msra.mxu0 0.0
        %1730 = vmatprep.subr.mxu0 0.0
        %1731 = vmatpush1.msra.mxu0 0.0
        %1732 = vmatprep.subr.mxu0 0.0
        %1733 = vmatpush1.msra.mxu0 0.0
        %1734 = vmatprep.subr.mxu0 0.0
        %1735 = vmatpush1.msra.mxu0 %v1264
        %1736 = vmatprep.subr.mxu0 0.0
        %1737 = vmatpush2.msra.mxu0 0.0
        %1738 = vmatprep.subr.mxu0 0.0
        %1739 = vmatpush2.msra.mxu0 0.0
        %1740 = vmatprep.subr.mxu0 0.0
        %1741 = vmatpush2.msra.mxu0 0.0
        %1742 = vmatprep.subr.mxu0 0.0
        %1743 = vmatpush2.msra.mxu0 0.0
        %1744 = vmatprep.subr.mxu0 0.0
        %1745 = vmatpush2.msra.mxu0 0.0
        %1746 = vmatprep.subr.mxu0 0.0
        %1747 = vmatpush2.msra.mxu0 0.0
        %1748 = vmatprep.subr.mxu0 0.0
        %1749 = vmatpush2.msra.mxu0 0.0
        %1750 = vmatprep.subr.mxu0 0.0
        %1751 = vmatpush2.msra.mxu0 0.0
        %1752 = vmatprep.subr.mxu0 0.0
        %1753 = vmatpush2.msra.mxu0 0.0
        %1754 = vmatprep.subr.mxu0 0.0
        %1755 = vmatpush2.msra.mxu0 0.0
        %1756 = vmatprep.subr.mxu0 0.0
        %1757 = vmatpush2.msra.mxu0 0.0
        %1758 = vmatprep.subr.mxu0 0.0
        %1759 = vmatpush2.msra.mxu0 0.0
        %1760 = vmatprep.subr.mxu0 0.0
        %1761 = vmatpush2.msra.mxu0 0.0
        %1762 = vmatprep.subr.mxu0 0.0
        %1763 = vmatpush2.msra.mxu0 0.0
        %1764 = vmatprep.subr.mxu0 0.0
        %1765 = vmatpush2.msra.mxu0 0.0
        %1766 = vmatprep.subr.mxu0 0.0
        %1767 = vmatpush2.msra.mxu0 0.0
        %1768 = vmatprep.mubr.f32.mxu0 0.0
        %1769 = vmatmul.mubr.f32.gmra.mxu0 %v1702
        %v1770 = vpop.f32.mrf.mxu0
        %v1771 = vadd.f32 0.0, %v1770
        %v1772 = vpop.f32.mrf.mxu0
        %1773 = vdwg.mxu0
        %v1775 = vsel %vm1583, %v1626, 0
        %1777 = vmatprep.subr.mxu0 0.0
        %1778 = vmatpush1.msra.mxu0 0.0
        %1779 = vmatprep.subr.mxu0 0.0
        %1780 = vmatpush1.msra.mxu0 0.0
        %1781 = vmatprep.subr.mxu0 0.0
        %1782 = vmatpush1.msra.mxu0 0.0
        %1783 = vmatprep.subr.mxu0 0.0
        %1784 = vmatpush1.msra.mxu0 0.0
        %1785 = vmatprep.subr.mxu0 0.0
        %1786 = vmatpush1.msra.mxu0 0.0
        %1787 = vmatprep.subr.mxu0 0.0
        %1788 = vmatpush1.msra.mxu0 0.0
        %1789 = vmatprep.subr.mxu0 0.0
        %1790 = vmatpush1.msra.mxu0 0.0
        %1791 = vmatprep.subr.mxu0 0.0
        %1792 = vmatpush1.msra.mxu0 0.0
        %1793 = vmatprep.subr.mxu0 0.0
        %1794 = vmatpush1.msra.mxu0 0.0
        %1795 = vmatprep.subr.mxu0 0.0
        %1796 = vmatpush1.msra.mxu0 0.0
        %1797 = vmatprep.subr.mxu0 0.0
        %1798 = vmatpush1.msra.mxu0 0.0
        %1799 = vmatprep.subr.mxu0 0.0
        %1800 = vmatpush1.msra.mxu0 0.0
        %1801 = vmatprep.subr.mxu0 0.0
        %1802 = vmatpush1.msra.mxu0 0.0
        %1803 = vmatprep.subr.mxu0 0.0
        %1804 = vmatpush1.msra.mxu0 0.0
        %1805 = vmatprep.subr.mxu0 0.0
        %1806 = vmatpush1.msra.mxu0 0.0
        %1807 = vmatprep.subr.mxu0 0.0
        %1808 = vmatpush1.msra.mxu0 %v1265
        %1809 = vmatprep.subr.mxu0 0.0
        %1810 = vmatpush2.msra.mxu0 0.0
        %1811 = vmatprep.subr.mxu0 0.0
        %1812 = vmatpush2.msra.mxu0 0.0
        %1813 = vmatprep.subr.mxu0 0.0
        %1814 = vmatpush2.msra.mxu0 0.0
        %1815 = vmatprep.subr.mxu0 0.0
        %1816 = vmatpush2.msra.mxu0 0.0
        %1817 = vmatprep.subr.mxu0 0.0
        %1818 = vmatpush2.msra.mxu0 0.0
        %1819 = vmatprep.subr.mxu0 0.0
        %1820 = vmatpush2.msra.mxu0 0.0
        %1821 = vmatprep.subr.mxu0 0.0
        %1822 = vmatpush2.msra.mxu0 0.0
        %1823 = vmatprep.subr.mxu0 0.0
        %1824 = vmatpush2.msra.mxu0 0.0
        %1825 = vmatprep.subr.mxu0 0.0
        %1826 = vmatpush2.msra.mxu0 0.0
        %1827 = vmatprep.subr.mxu0 0.0
        %1828 = vmatpush2.msra.mxu0 0.0
        %1829 = vmatprep.subr.mxu0 0.0
        %1830 = vmatpush2.msra.mxu0 0.0
        %1831 = vmatprep.subr.mxu0 0.0
        %1832 = vmatpush2.msra.mxu0 0.0
        %1833 = vmatprep.subr.mxu0 0.0
        %1834 = vmatpush2.msra.mxu0 0.0
        %1835 = vmatprep.subr.mxu0 0.0
        %1836 = vmatpush2.msra.mxu0 0.0
        %1837 = vmatprep.subr.mxu0 0.0
        %1838 = vmatpush2.msra.mxu0 0.0
        %1839 = vmatprep.subr.mxu0 0.0
        %1840 = vmatpush2.msra.mxu0 0.0
        %1841 = vmatprep.mubr.f32.mxu0 0.0
        %1842 = vmatmul.mubr.f32.gmra.mxu0 %v1775
        %v1843 = vpop.f32.mrf.mxu0
        %v1844 = vadd.f32 0.0, %v1843
        %v1845 = vpop.f32.mrf.mxu0
        %1846 = vdwg.mxu0
        %v1848 = vsel %vm1583, %v1627, 0
        %1850 = vmatprep.subr.mxu0 0.0
        %1851 = vmatpush1.msra.mxu0 0.0
        %1852 = vmatprep.subr.mxu0 0.0
        %1853 = vmatpush1.msra.mxu0 0.0
        %1854 = vmatprep.subr.mxu0 0.0
        %1855 = vmatpush1.msra.mxu0 0.0
        %1856 = vmatprep.subr.mxu0 0.0
        %1857 = vmatpush1.msra.mxu0 0.0
        %1858 = vmatprep.subr.mxu0 0.0
        %1859 = vmatpush1.msra.mxu0 0.0
        %1860 = vmatprep.subr.mxu0 0.0
        %1861 = vmatpush1.msra.mxu0 0.0
        %1862 = vmatprep.subr.mxu0 0.0
        %1863 = vmatpush1.msra.mxu0 0.0
        %1864 = vmatprep.subr.mxu0 0.0
        %1865 = vmatpush1.msra.mxu0 0.0
        %1866 = vmatprep.subr.mxu0 0.0
        %1867 = vmatpush1.msra.mxu0 0.0
        %1868 = vmatprep.subr.mxu0 0.0
        %1869 = vmatpush1.msra.mxu0 0.0
        %1870 = vmatprep.subr.mxu0 0.0
        %1871 = vmatpush1.msra.mxu0 0.0
        %1872 = vmatprep.subr.mxu0 0.0
        %1873 = vmatpush1.msra.mxu0 0.0
        %1874 = vmatprep.subr.mxu0 0.0
        %1875 = vmatpush1.msra.mxu0 0.0
        %1876 = vmatprep.subr.mxu0 0.0
        %1877 = vmatpush1.msra.mxu0 0.0
        %1878 = vmatprep.subr.mxu0 0.0
        %1879 = vmatpush1.msra.mxu0 0.0
        %1880 = vmatprep.subr.mxu0 0.0
        %1881 = vmatpush1.msra.mxu0 %v1266
        %1882 = vmatprep.subr.mxu0 0.0
        %1883 = vmatpush2.msra.mxu0 0.0
        %1884 = vmatprep.subr.mxu0 0.0
        %1885 = vmatpush2.msra.mxu0 0.0
        %1886 = vmatprep.subr.mxu0 0.0
        %1887 = vmatpush2.msra.mxu0 0.0
        %1888 = vmatprep.subr.mxu0 0.0
        %1889 = vmatpush2.msra.mxu0 0.0
        %1890 = vmatprep.subr.mxu0 0.0
        %1891 = vmatpush2.msra.mxu0 0.0
        %1892 = vmatprep.subr.mxu0 0.0
        %1893 = vmatpush2.msra.mxu0 0.0
        %1894 = vmatprep.subr.mxu0 0.0
        %1895 = vmatpush2.msra.mxu0 0.0
        %1896 = vmatprep.subr.mxu0 0.0
        %1897 = vmatpush2.msra.mxu0 0.0
        %1898 = vmatprep.subr.mxu0 0.0
        %1899 = vmatpush2.msra.mxu0 0.0
        %1900 = vmatprep.subr.mxu0 0.0
        %1901 = vmatpush2.msra.mxu0 0.0
        %1902 = vmatprep.subr.mxu0 0.0
        %1903 = vmatpush2.msra.mxu0 0.0
        %1904 = vmatprep.subr.mxu0 0.0
        %1905 = vmatpush2.msra.mxu0 0.0
        %1906 = vmatprep.subr.mxu0 0.0
        %1907 = vmatpush2.msra.mxu0 0.0
        %1908 = vmatprep.subr.mxu0 0.0
        %1909 = vmatpush2.msra.mxu0 0.0
        %1910 = vmatprep.subr.mxu0 0.0
        %1911 = vmatpush2.msra.mxu0 0.0
        %1912 = vmatprep.subr.mxu0 0.0
        %1913 = vmatpush2.msra.mxu0 0.0
        %1914 = vmatprep.mubr.f32.mxu0 0.0
        %1915 = vmatmul.mubr.f32.gmra.mxu0 %v1848
        %v1916 = vpop.f32.mrf.mxu0
        %v1917 = vadd.f32 0.0, %v1916
        %v1918 = vpop.f32.mrf.mxu0
        %1919 = vdwg.mxu0
        %v1920 = vcombine.low %v1698, %v1844
        %v1921 = vcombine.high %v1698, %v1844
        %v1923 = vunpack.c.l.s4 1983009808
        %v1924 = vunpack.c.0.s8 %v1923
        %v1925 = vlaneseq
        %v1926 = vshrl.u32 %v1925, 7
        %v1927 = vsub.s32 %v1924, %v1926
        %v1928 = vrot.slane %v1920, %v1927
        %v1930 = vunpack.c.l.s4 1983009808
        %v1931 = vunpack.c.0.s8 %v1930
        %v1932 = vlaneseq
        %v1933 = vshrl.u32 %v1932, 7
        %v1934 = vsub.s32 %v1931, %v1933
        %v1935 = vrot.slane %v1921, %v1934
        %v1936 = vcombine.low %v1771, %v1917
        %v1937 = vcombine.high %v1771, %v1917
        %v1939 = vunpack.c.l.s4 1983009808
        %v1940 = vunpack.c.0.s8 %v1939
        %v1941 = vlaneseq
        %v1942 = vshrl.u32 %v1941, 7
        %v1943 = vsub.s32 %v1940, %v1942
        %v1944 = vrot.slane %v1936, %v1943
        %v1946 = vunpack.c.l.s4 1983009808
        %v1947 = vunpack.c.0.s8 %v1946
        %v1948 = vlaneseq
        %v1949 = vshrl.u32 %v1948, 7
        %v1950 = vsub.s32 %v1947, %v1949
        %v1951 = vrot.slane %v1937, %v1950
        %v1952 = vcombine.low %v1928, %v1944
        %v1953 = vcombine.high %v1928, %v1944
        %v1955 = vunpack.c.l.s4 1934713408
        %v1956 = vunpack.c.0.s8 %v1955
        %v1957 = vlaneseq
        %v1958 = vshrl.u32 %v1957, 7
        %v1959 = vsub.s32 %v1956, %v1958
        %v1960 = vrot.slane %v1952, %v1959
        %v1962 = vunpack.c.l.s4 1934713408
        %v1963 = vunpack.c.0.s8 %v1962
        %v1964 = vlaneseq
        %v1965 = vshrl.u32 %v1964, 7
        %v1966 = vsub.s32 %v1963, %v1965
        %v1967 = vrot.slane %v1953, %v1966
        %v1968 = vcombine.low %v1935, %v1951
        %v1969 = vcombine.high %v1935, %v1951
        %v1971 = vunpack.c.l.s4 1934713408
        %v1972 = vunpack.c.0.s8 %v1971
        %v1973 = vlaneseq
        %v1974 = vshrl.u32 %v1973, 7
        %v1975 = vsub.s32 %v1972, %v1974
        %v1976 = vrot.slane %v1968, %v1975
        %v1978 = vunpack.c.l.s4 1934713408
        %v1979 = vunpack.c.0.s8 %v1978
        %v1980 = vlaneseq
        %v1981 = vshrl.u32 %v1980, 7
        %v1982 = vsub.s32 %v1979, %v1981
        %v1983 = vrot.slane %v1969, %v1982
        %v1984 = vcombine.high %v1960, 0.0
        %v1985 = vcombine.high %v1967, 0.0
        %v1986 = vcombine.high %v1976, 0.0
        %v1987 = vcombine.high %v1983, 0.0
        %v1988 = vcombine.low %v1960, %v1967
        %v1990 = vunpack.c.l.s4 1983009808
        %v1991 = vunpack.c.0.s8 %v1990
        %v1992 = vlaneseq
        %v1993 = vshrl.u32 %v1992, 7
        %v1994 = vsub.s32 %v1991, %v1993
        %v1995 = vrot.slane %v1988, %v1994
        %v1996 = vcombine.low %v1984, %v1985
        %v1998 = vunpack.c.l.s4 1983009808
        %v1999 = vunpack.c.0.s8 %v1998
        %v2000 = vlaneseq
        %v2001 = vshrl.u32 %v2000, 7
        %v2002 = vsub.s32 %v1999, %v2001
        %v2003 = vrot.slane %v1996, %v2002
        %v2004 = vcombine.low %v1976, %v1983
        %v2006 = vunpack.c.l.s4 1983009808
        %v2007 = vunpack.c.0.s8 %v2006
        %v2008 = vlaneseq
        %v2009 = vshrl.u32 %v2008, 7
        %v2010 = vsub.s32 %v2007, %v2009
        %v2011 = vrot.slane %v2004, %v2010
        %v2012 = vcombine.low %v1986, %v1987
        %v2014 = vunpack.c.l.s4 1983009808
        %v2015 = vunpack.c.0.s8 %v2014
        %v2016 = vlaneseq
        %v2017 = vshrl.u32 %v2016, 7
        %v2018 = vsub.s32 %v2015, %v2017
        %v2019 = vrot.slane %v2012, %v2018
        %v2020 = vcombine.low %v1995, %v2003
        %v2021 = vcombine.high %v1995, %v2003
        %v2023 = vunpack.c.l.s4 1934713408
        %v2024 = vunpack.c.0.s8 %v2023
        %v2025 = vlaneseq
        %v2026 = vshrl.u32 %v2025, 7
        %v2027 = vsub.s32 %v2024, %v2026
        %v2028 = vrot.slane %v2020, %v2027
        %v2030 = vunpack.c.l.s4 1934713408
        %v2031 = vunpack.c.0.s8 %v2030
        %v2032 = vlaneseq
        %v2033 = vshrl.u32 %v2032, 7
        %v2034 = vsub.s32 %v2031, %v2033
        %v2035 = vrot.slane %v2021, %v2034
        %v2036 = vcombine.low %v2011, %v2019
        %v2037 = vcombine.high %v2011, %v2019
        %v2039 = vunpack.c.l.s4 1934713408
        %v2040 = vunpack.c.0.s8 %v2039
        %v2041 = vlaneseq
        %v2042 = vshrl.u32 %v2041, 7
        %v2043 = vsub.s32 %v2040, %v2042
        %v2044 = vrot.slane %v2036, %v2043
        %v2046 = vunpack.c.l.s4 1934713408
        %v2047 = vunpack.c.0.s8 %v2046
        %v2048 = vlaneseq
        %v2049 = vshrl.u32 %v2048, 7
        %v2050 = vsub.s32 %v2047, %v2049
        %v2051 = vrot.slane %v2037, %v2050
        %v2052 = vcombine.low %v2028, %v2044
        %v2053 = vcombine.high %v2028, %v2044
        %v2054 = vcombine.low %v2035, %v2051
        %v2055 = vcombine.high %v2035, %v2051
        %2057 = vrot.lane.b32.xlu0 %v2053, 32
        %v2058 = vpop.permute.xlu0 %2057
        %2061 = vrot.lane.b32.xlu0 %v2054, 64
        %v2062 = vpop.permute.xlu0 %2061
        %2065 = vrot.lane.b32.xlu0 %v2055, 96
        %v2066 = vpop.permute.xlu0 %2065
        %v2068 = vsel %vm1267, %v2052, %v2058
        %vm2069 = vcmask 523264
        %v2070 = vsel %vm2069, %v2068, %v2062
        %vm2071 = vcmask 785408
        %v2072 = vsel %vm2071, %v2070, %v2066
        %v2073 = vpack.c.bf16 %v2072, %v2072
        %v2074 = vld [vmem:[#allocation10] sm:$0xf]
        %v2075 = vld [vmem:[#allocation10 + $0x4] sm:$0xf]
        %v2076 = vld [vmem:[#allocation10 + $0x8] sm:$0xf]
        %v2077 = vld [vmem:[#allocation10 + $0xc] sm:$0xf]
        %v2078 = vld [vmem:[#allocation10 + $0x10] sm:$0xf]
        %v2079 = vld [vmem:[#allocation10 + $0x14] sm:$0xf]
        %v2080 = vld [vmem:[#allocation10 + $0x18] sm:$0xf]
        %v2081 = vld [vmem:[#allocation10 + $0x1c] sm:$0xf]
        %v2082 = vld [vmem:[#allocation10 + $0x20] sm:$0xf]
        %v2083 = vld [vmem:[#allocation10 + $0x24] sm:$0xf]
        %v2084 = vld [vmem:[#allocation10 + $0x28] sm:$0xf]
        %v2085 = vld [vmem:[#allocation10 + $0x2c] sm:$0xf]
        %v2086 = vld [vmem:[#allocation10 + $0x30] sm:$0xf]
        %v2087 = vld [vmem:[#allocation10 + $0x34] sm:$0xf]
        %v2088 = vld [vmem:[#allocation10 + $0x38] sm:$0xf]
        %v2089 = vld [vmem:[#allocation10 + $0x3c] sm:$0xf]
        %v2090 = vld [vmem:[%s6] sm:$0x1]
        %v2092 = vlaneseq
        %v2093 = vshrl.u32 %v2092, 7
        %v2094 = vsub.s32 0, %v2093
        %v2095 = vrot.slane %v2090, %v2094
        %v2113 = vunpack.c.l.b16 %v2074
        %v2114 = vunpack.c.l.b16 %v2075
        %v2115 = vunpack.c.l.b16 %v2076
        %v2116 = vunpack.c.l.b16 %v2077
        %v2117 = vunpack.c.l.b16 %v2078
        %v2118 = vunpack.c.l.b16 %v2079
        %v2119 = vunpack.c.l.b16 %v2080
        %v2120 = vunpack.c.l.b16 %v2081
        %v2121 = vunpack.c.l.b16 %v2082
        %v2122 = vunpack.c.l.b16 %v2083
        %v2123 = vunpack.c.l.b16 %v2084
        %v2124 = vunpack.c.l.b16 %v2085
        %v2125 = vunpack.c.l.b16 %v2086
        %v2126 = vunpack.c.l.b16 %v2087
        %v2127 = vunpack.c.l.b16 %v2088
        %v2128 = vunpack.c.l.b16 %v2089
        %v2129 = vpack.c.b16 %v2114, %v2113
        %v2130 = vpack.c.b16 %v2116, %v2115
        %v2131 = vpack.c.b16 %v2118, %v2117
        %v2132 = vpack.c.b16 %v2120, %v2119
        %v2133 = vpack.c.b16 %v2122, %v2121
        %v2134 = vpack.c.b16 %v2124, %v2123
        %v2135 = vpack.c.b16 %v2126, %v2125
        %v2136 = vpack.c.b16 %v2128, %v2127
        %2145 = vmatprep.subr.bf16.mxu0 0
        %2146 = vmatpush1.bf16.msra.mxu0 %v2136
        %2147 = vmatprep.subr.bf16.mxu0 0
        %2148 = vmatpush1.bf16.msra.mxu0 %v2135
        %2149 = vmatprep.subr.bf16.mxu0 0
        %2150 = vmatpush1.bf16.msra.mxu0 %v2134
        %2151 = vmatprep.subr.bf16.mxu0 0
        %2152 = vmatpush1.bf16.msra.mxu0 %v2133
        %2153 = vmatprep.subr.bf16.mxu0 0
        %2154 = vmatpush1.bf16.msra.mxu0 %v2132
        %2155 = vmatprep.subr.bf16.mxu0 0
        %2156 = vmatpush1.bf16.msra.mxu0 %v2131
        %2157 = vmatprep.subr.bf16.mxu0 0
        %2158 = vmatpush1.bf16.msra.mxu0 %v2130
        %2159 = vmatprep.subr.bf16.mxu0 0
        %2160 = vmatpush1.bf16.msra.mxu0 %v2129
        %2161 = vmatprep.subr.bf16.mxu0 0
        %2162 = vmatpush2.bf16.msra.mxu0 0
        %2163 = vmatprep.subr.bf16.mxu0 0
        %2164 = vmatpush2.bf16.msra.mxu0 0
        %2165 = vmatprep.subr.bf16.mxu0 0
        %2166 = vmatpush2.bf16.msra.mxu0 0
        %2167 = vmatprep.subr.bf16.mxu0 0
        %2168 = vmatpush2.bf16.msra.mxu0 0
        %2169 = vmatprep.subr.bf16.mxu0 0
        %2170 = vmatpush2.bf16.msra.mxu0 0
        %2171 = vmatprep.subr.bf16.mxu0 0
        %2172 = vmatpush2.bf16.msra.mxu0 0
        %2173 = vmatprep.subr.bf16.mxu0 0
        %2174 = vmatpush2.bf16.msra.mxu0 0
        %2175 = vmatprep.subr.bf16.mxu0 0
        %2176 = vmatpush2.bf16.msra.mxu0 0
        %2177 = vmatprep.mubr.bf16.mxu0 0
        %2178 = vmatmul.mubr.bf16.gmra.mxu0 %v2073
        %v2179 = vpop.f32.mrf.mxu0
        %v2180 = vadd.f32 %v2095, %v2179
        %v2181 = vpop.f32.mrf.mxu0
        %v2182 = vpop.f32.mrf.mxu0
        %v2183 = vpop.f32.mrf.mxu0
        %2184 = vdwg.mxu0
        %v2185 = vadd.f32 %v540, %v2180
        %v2186 = vld [vmem:[%s7] sm:$0x1]
        %v2187 = vld [vmem:[%s8] sm:$0x1]
        %2188 = vadd.xlane.f32.xlu0 %v2185
        %v2189 = vpop.xlane.xlu0 %2188
        %v2190 = vmul.f32 %v2189, %v545
        %v2191 = vsub.f32 %v2185, %v2190
        %v2192 = vmul.f32 %v2191, %v2191
        %2193 = vadd.xlane.f32.xlu0 %v2192
        %v2194 = vpop.xlane.xlu0 %2193
        %v2195 = vmul.f32 %v2194, %v545
        %v2196 = vadd.f32 %v2195, 1e-05
        %v2197 = vrsqrt.pop %v2196
        %v2198 = vmul.f32 %v2191, %v2197
        %v2200 = vlaneseq
        %v2201 = vshrl.u32 %v2200, 7
        %v2202 = vsub.s32 0, %v2201
        %v2203 = vrot.slane %v2186, %v2202
        %v2205 = vmul.f32 %v2198, %v2203
        %v2207 = vlaneseq
        %v2208 = vshrl.u32 %v2207, 7
        %v2209 = vsub.s32 0, %v2208
        %v2210 = vrot.slane %v2187, %v2209
        %v2212 = vadd.f32 %v2205, %v2210
        %v2213 = vpack.c.bf16 %v2212, %v2212
        %v2214 = vld [vmem:[#allocation11] sm:$0xff]
        %v2215 = vld [vmem:[#allocation11 + $0x8] sm:$0xff]
        %v2216 = vld [vmem:[#allocation11 + $0x10] sm:$0xff]
        %v2217 = vld [vmem:[#allocation11 + $0x18] sm:$0xff]
        %v2218 = vld [vmem:[#allocation11 + $0x20] sm:$0xff]
        %v2219 = vld [vmem:[#allocation11 + $0x28] sm:$0xff]
        %v2220 = vld [vmem:[#allocation11 + $0x30] sm:$0xff]
        %v2221 = vld [vmem:[#allocation11 + $0x38] sm:$0xff]
        %v2222 = vld [vmem:[#allocation11 + $0x40] sm:$0xff]
        %v2223 = vld [vmem:[#allocation11 + $0x48] sm:$0xff]
        %v2224 = vld [vmem:[#allocation11 + $0x50] sm:$0xff]
        %v2225 = vld [vmem:[#allocation11 + $0x58] sm:$0xff]
        %v2226 = vld [vmem:[#allocation11 + $0x60] sm:$0xff]
        %v2227 = vld [vmem:[#allocation11 + $0x68] sm:$0xff]
        %v2228 = vld [vmem:[#allocation11 + $0x70] sm:$0xff]
        %v2229 = vld [vmem:[#allocation11 + $0x78] sm:$0xff]
        %v2230 = vld [vmem:[#allocation11 + $0x80] sm:$0xff]
        %v2231 = vld [vmem:[#allocation11 + $0x88] sm:$0xff]
        %v2232 = vld [vmem:[#allocation11 + $0x90] sm:$0xff]
        %v2233 = vld [vmem:[#allocation11 + $0x98] sm:$0xff]
        %v2234 = vld [vmem:[#allocation11 + $0xa0] sm:$0xff]
        %v2235 = vld [vmem:[#allocation11 + $0xa8] sm:$0xff]
        %v2236 = vld [vmem:[#allocation11 + $0xb0] sm:$0xff]
        %v2237 = vld [vmem:[#allocation11 + $0xb8] sm:$0xff]
        %v2238 = vld [vmem:[#allocation11 + $0xc0] sm:$0xff]
        %v2239 = vld [vmem:[#allocation11 + $0xc8] sm:$0xff]
        %v2240 = vld [vmem:[#allocation11 + $0xd0] sm:$0xff]
        %v2241 = vld [vmem:[#allocation11 + $0xd8] sm:$0xff]
        %v2242 = vld [vmem:[#allocation11 + $0xe0] sm:$0xff]
        %v2243 = vld [vmem:[#allocation11 + $0xe8] sm:$0xff]
        %v2244 = vld [vmem:[#allocation11 + $0xf0] sm:$0xff]
        %v2245 = vld [vmem:[#allocation11 + $0xf8] sm:$0xff]
        %v2246 = vld [vmem:[%s10] sm:$0xf]
        %v2248 = vlaneseq
        %v2249 = vshrl.u32 %v2248, 7
        %v2250 = vsub.s32 0, %v2249
        %v2251 = vrot.slane %v2246, %v2250
        %v2252 = vlaneseq
        %v2253 = vshrl.u32 %v2252, 7
        %v2254 = vsub.s32 1, %v2253
        %v2255 = vrot.slane %v2246, %v2254
        %v2256 = vlaneseq
        %v2257 = vshrl.u32 %v2256, 7
        %v2258 = vsub.s32 2, %v2257
        %v2259 = vrot.slane %v2246, %v2258
        %v2260 = vlaneseq
        %v2261 = vshrl.u32 %v2260, 7
        %v2262 = vsub.s32 3, %v2261
        %v2263 = vrot.slane %v2246, %v2262
        %v2300 = vunpack.c.l.b16 %v2214
        %v2301 = vunpack.c.h.b16 %v2214
        %v2302 = vunpack.c.l.b16 %v2215
        %v2303 = vunpack.c.h.b16 %v2215
        %v2304 = vunpack.c.l.b16 %v2216
        %v2305 = vunpack.c.h.b16 %v2216
        %v2306 = vunpack.c.l.b16 %v2217
        %v2307 = vunpack.c.h.b16 %v2217
        %v2308 = vunpack.c.l.b16 %v2218
        %v2309 = vunpack.c.h.b16 %v2218
        %v2310 = vunpack.c.l.b16 %v2219
        %v2311 = vunpack.c.h.b16 %v2219
        %v2312 = vunpack.c.l.b16 %v2220
        %v2313 = vunpack.c.h.b16 %v2220
        %v2314 = vunpack.c.l.b16 %v2221
        %v2315 = vunpack.c.h.b16 %v2221
        %v2316 = vunpack.c.l.b16 %v2222
        %v2317 = vunpack.c.h.b16 %v2222
        %v2318 = vunpack.c.l.b16 %v2223
        %v2319 = vunpack.c.h.b16 %v2223
        %v2320 = vunpack.c.l.b16 %v2224
        %v2321 = vunpack.c.h.b16 %v2224
        %v2322 = vunpack.c.l.b16 %v2225
        %v2323 = vunpack.c.h.b16 %v2225
        %v2324 = vunpack.c.l.b16 %v2226
        %v2325 = vunpack.c.h.b16 %v2226
        %v2326 = vunpack.c.l.b16 %v2227
        %v2327 = vunpack.c.h.b16 %v2227
        %v2328 = vunpack.c.l.b16 %v2228
        %v2329 = vunpack.c.h.b16 %v2228
        %v2330 = vunpack.c.l.b16 %v2229
        %v2331 = vunpack.c.h.b16 %v2229
        %v2332 = vunpack.c.l.b16 %v2230
        %v2333 = vunpack.c.h.b16 %v2230
        %v2334 = vunpack.c.l.b16 %v2231
        %v2335 = vunpack.c.h.b16 %v2231
        %v2336 = vunpack.c.l.b16 %v2232
        %v2337 = vunpack.c.h.b16 %v2232
        %v2338 = vunpack.c.l.b16 %v2233
        %v2339 = vunpack.c.h.b16 %v2233
        %v2340 = vunpack.c.l.b16 %v2234
        %v2341 = vunpack.c.h.b16 %v2234
        %v2342 = vunpack.c.l.b16 %v2235
        %v2343 = vunpack.c.h.b16 %v2235
        %v2344 = vunpack.c.l.b16 %v2236
        %v2345 = vunpack.c.h.b16 %v2236
        %v2346 = vunpack.c.l.b16 %v2237
        %v2347 = vunpack.c.h.b16 %v2237
        %v2348 = vunpack.c.l.b16 %v2238
        %v2349 = vunpack.c.h.b16 %v2238
        %v2350 = vunpack.c.l.b16 %v2239
        %v2351 = vunpack.c.h.b16 %v2239
        %v2352 = vunpack.c.l.b16 %v2240
        %v2353 = vunpack.c.h.b16 %v2240
        %v2354 = vunpack.c.l.b16 %v2241
        %v2355 = vunpack.c.h.b16 %v2241
        %v2356 = vunpack.c.l.b16 %v2242
        %v2357 = vunpack.c.h.b16 %v2242
        %v2358 = vunpack.c.l.b16 %v2243
        %v2359 = vunpack.c.h.b16 %v2243
        %v2360 = vunpack.c.l.b16 %v2244
        %v2361 = vunpack.c.h.b16 %v2244
        %v2362 = vunpack.c.l.b16 %v2245
        %v2363 = vunpack.c.h.b16 %v2245
        %v2364 = vpack.c.b16 %v2304, %v2300
        %v2365 = vpack.c.b16 %v2305, %v2301
        %v2366 = vpack.c.b16 %v2306, %v2302
        %v2367 = vpack.c.b16 %v2307, %v2303
        %v2368 = vpack.c.b16 %v2312, %v2308
        %v2369 = vpack.c.b16 %v2313, %v2309
        %v2370 = vpack.c.b16 %v2314, %v2310
        %v2371 = vpack.c.b16 %v2315, %v2311
        %v2372 = vpack.c.b16 %v2320, %v2316
        %v2373 = vpack.c.b16 %v2321, %v2317
        %v2374 = vpack.c.b16 %v2322, %v2318
        %v2375 = vpack.c.b16 %v2323, %v2319
        %v2376 = vpack.c.b16 %v2328, %v2324
        %v2377 = vpack.c.b16 %v2329, %v2325
        %v2378 = vpack.c.b16 %v2330, %v2326
        %v2379 = vpack.c.b16 %v2331, %v2327
        %v2380 = vpack.c.b16 %v2336, %v2332
        %v2381 = vpack.c.b16 %v2337, %v2333
        %v2382 = vpack.c.b16 %v2338, %v2334
        %v2383 = vpack.c.b16 %v2339, %v2335
        %v2384 = vpack.c.b16 %v2344, %v2340
        %v2385 = vpack.c.b16 %v2345, %v2341
        %v2386 = vpack.c.b16 %v2346, %v2342
        %v2387 = vpack.c.b16 %v2347, %v2343
        %v2388 = vpack.c.b16 %v2352, %v2348
        %v2389 = vpack.c.b16 %v2353, %v2349
        %v2390 = vpack.c.b16 %v2354, %v2350
        %v2391 = vpack.c.b16 %v2355, %v2351
        %v2392 = vpack.c.b16 %v2360, %v2356
        %v2393 = vpack.c.b16 %v2361, %v2357
        %v2394 = vpack.c.b16 %v2362, %v2358
        %v2395 = vpack.c.b16 %v2363, %v2359
        %2428 = vmatprep.subr.bf16.mxu0 %v2393
        %2429 = vmatpush1.bf16.msra.mxu0 %v2392
        %2430 = vmatprep.subr.bf16.mxu0 %v2389
        %2431 = vmatpush1.bf16.msra.mxu0 %v2388
        %2432 = vmatprep.subr.bf16.mxu0 %v2385
        %2433 = vmatpush1.bf16.msra.mxu0 %v2384
        %2434 = vmatprep.subr.bf16.mxu0 %v2381
        %2435 = vmatpush1.bf16.msra.mxu0 %v2380
        %2436 = vmatprep.subr.bf16.mxu0 %v2377
        %2437 = vmatpush1.bf16.msra.mxu0 %v2376
        %2438 = vmatprep.subr.bf16.mxu0 %v2373
        %2439 = vmatpush1.bf16.msra.mxu0 %v2372
        %2440 = vmatprep.subr.bf16.mxu0 %v2369
        %2441 = vmatpush1.bf16.msra.mxu0 %v2368
        %2442 = vmatprep.subr.bf16.mxu0 %v2365
        %2443 = vmatpush1.bf16.msra.mxu0 %v2364
        %2444 = vmatprep.subr.bf16.mxu0 0
        %2445 = vmatpush2.bf16.msra.mxu0 0
        %2446 = vmatprep.subr.bf16.mxu0 0
        %2447 = vmatpush2.bf16.msra.mxu0 0
        %2448 = vmatprep.subr.bf16.mxu0 0
        %2449 = vmatpush2.bf16.msra.mxu0 0
        %2450 = vmatprep.subr.bf16.mxu0 0
        %2451 = vmatpush2.bf16.msra.mxu0 0
        %2452 = vmatprep.subr.bf16.mxu0 0
        %2453 = vmatpush2.bf16.msra.mxu0 0
        %2454 = vmatprep.subr.bf16.mxu0 0
        %2455 = vmatpush2.bf16.msra.mxu0 0
        %2456 = vmatprep.subr.bf16.mxu0 0
        %2457 = vmatpush2.bf16.msra.mxu0 0
        %2458 = vmatprep.subr.bf16.mxu0 0
        %2459 = vmatpush2.bf16.msra.mxu0 0
        %2460 = vmatprep.mubr.bf16.mxu0 0
        %2461 = vmatmul.mubr.bf16.gmra.mxu0 %v2213
        %v2462 = vpop.f32.mrf.mxu0
        %v2463 = vadd.f32 %v2251, %v2462
        %v2464 = vpop.f32.mrf.mxu0
        %v2465 = vadd.f32 %v2255, %v2464
        %v2466 = vpop.f32.mrf.mxu0
        %v2467 = vpop.f32.mrf.mxu0
        %2468 = vdwg.mxu0
        %2469 = vmatprep.subr.bf16.mxu0 %v2395
        %2470 = vmatpush1.bf16.msra.mxu0 %v2394
        %2471 = vmatprep.subr.bf16.mxu0 %v2391
        %2472 = vmatpush1.bf16.msra.mxu0 %v2390
        %2473 = vmatprep.subr.bf16.mxu0 %v2387
        %2474 = vmatpush1.bf16.msra.mxu0 %v2386
        %2475 = vmatprep.subr.bf16.mxu0 %v2383
        %2476 = vmatpush1.bf16.msra.mxu0 %v2382
        %2477 = vmatprep.subr.bf16.mxu0 %v2379
        %2478 = vmatpush1.bf16.msra.mxu0 %v2378
        %2479 = vmatprep.subr.bf16.mxu0 %v2375
        %2480 = vmatpush1.bf16.msra.mxu0 %v2374
        %2481 = vmatprep.subr.bf16.mxu0 %v2371
        %2482 = vmatpush1.bf16.msra.mxu0 %v2370
        %2483 = vmatprep.subr.bf16.mxu0 %v2367
        %2484 = vmatpush1.bf16.msra.mxu0 %v2366
        %2485 = vmatprep.subr.bf16.mxu0 0
        %2486 = vmatpush2.bf16.msra.mxu0 0
        %2487 = vmatprep.subr.bf16.mxu0 0
        %2488 = vmatpush2.bf16.msra.mxu0 0
        %2489 = vmatprep.subr.bf16.mxu0 0
        %2490 = vmatpush2.bf16.msra.mxu0 0
        %2491 = vmatprep.subr.bf16.mxu0 0
        %2492 = vmatpush2.bf16.msra.mxu0 0
        %2493 = vmatprep.subr.bf16.mxu0 0
        %2494 = vmatpush2.bf16.msra.mxu0 0
        %2495 = vmatprep.subr.bf16.mxu0 0
        %2496 = vmatpush2.bf16.msra.mxu0 0
        %2497 = vmatprep.subr.bf16.mxu0 0
        %2498 = vmatpush2.bf16.msra.mxu0 0
        %2499 = vmatprep.subr.bf16.mxu0 0
        %2500 = vmatpush2.bf16.msra.mxu0 0
        %2501 = vmatprep.mubr.bf16.mxu0 0
        %2502 = vmatmul.mubr.bf16.gmra.mxu0 %v2213
        %v2503 = vpop.f32.mrf.mxu0
        %v2504 = vadd.f32 %v2259, %v2503
        %v2505 = vpop.f32.mrf.mxu0
        %v2506 = vadd.f32 %v2263, %v2505
        %v2507 = vpop.f32.mrf.mxu0
        %v2508 = vpop.f32.mrf.mxu0
        %2509 = vdwg.mxu0
        %v2510 = vmul.f32 %v2463, 0.5
        %v2511 = vmul.f32 %v2465, 0.5
        %v2512 = vmul.f32 %v2504, 0.5
        %v2513 = vmul.f32 %v2506, 0.5
        %v2514 = vmul.f32 %v2463, 0.044715
        %v2515 = vmul.f32 %v2465, 0.044715
        %v2516 = vmul.f32 %v2504, 0.044715
        %v2517 = vmul.f32 %v2506, 0.044715
        %v2518 = vmul.f32 %v2514, %v2463
        %v2519 = vmul.f32 %v2515, %v2465
        %v2520 = vmul.f32 %v2516, %v2504
        %v2521 = vmul.f32 %v2517, %v2506
        %v2522 = vmul.f32 %v2518, %v2463
        %v2523 = vmul.f32 %v2519, %v2465
        %v2524 = vmul.f32 %v2520, %v2504
        %v2525 = vmul.f32 %v2521, %v2506
        %v2526 = vadd.f32 %v2463, %v2522
        %v2527 = vadd.f32 %v2465, %v2523
        %v2528 = vadd.f32 %v2504, %v2524
        %v2529 = vadd.f32 %v2506, %v2525
        %v2530 = vmul.f32 %v2526, 0.7978846
        %v2531 = vmul.f32 %v2527, 0.7978846
        %v2532 = vmul.f32 %v2528, 0.7978846
        %v2533 = vmul.f32 %v2529, 0.7978846
        %v2534 = vtanh.pop %v2530
        %v2535 = vtanh.pop %v2531
        %v2536 = vtanh.pop %v2532
        %v2537 = vtanh.pop %v2533
        %v2538 = vadd.f32 %v2534, 1.0
        %v2539 = vadd.f32 %v2535, 1.0
        %v2540 = vadd.f32 %v2536, 1.0
        %v2541 = vadd.f32 %v2537, 1.0
        %v2542 = vmul.f32 %v2510, %v2538
        %v2543 = vmul.f32 %v2511, %v2539
        %v2544 = vmul.f32 %v2512, %v2540
        %v2545 = vmul.f32 %v2513, %v2541
        %v2546 = vpack.c.bf16 %v2542, %v2542
        %v2547 = vpack.c.bf16 %v2543, %v2543
        %v2548 = vpack.c.bf16 %v2544, %v2544
        %v2549 = vpack.c.bf16 %v2545, %v2545
        %v2550 = vld [vmem:[#allocation13] sm:$0xf]
        %v2551 = vld [vmem:[#allocation13 + $0x4] sm:$0xf]
        %v2552 = vld [vmem:[#allocation13 + $0x8] sm:$0xf]
        %v2553 = vld [vmem:[#allocation13 + $0xc] sm:$0xf]
        %v2554 = vld [vmem:[#allocation13 + $0x10] sm:$0xf]
        %v2555 = vld [vmem:[#allocation13 + $0x14] sm:$0xf]
        %v2556 = vld [vmem:[#allocation13 + $0x18] sm:$0xf]
        %v2557 = vld [vmem:[#allocation13 + $0x1c] sm:$0xf]
        %v2558 = vld [vmem:[#allocation13 + $0x20] sm:$0xf]
        %v2559 = vld [vmem:[#allocation13 + $0x24] sm:$0xf]
        %v2560 = vld [vmem:[#allocation13 + $0x28] sm:$0xf]
        %v2561 = vld [vmem:[#allocation13 + $0x2c] sm:$0xf]
        %v2562 = vld [vmem:[#allocation13 + $0x30] sm:$0xf]
        %v2563 = vld [vmem:[#allocation13 + $0x34] sm:$0xf]
        %v2564 = vld [vmem:[#allocation13 + $0x38] sm:$0xf]
        %v2565 = vld [vmem:[#allocation13 + $0x3c] sm:$0xf]
        %v2566 = vld [vmem:[#allocation13 + $0x40] sm:$0xf]
        %v2567 = vld [vmem:[#allocation13 + $0x44] sm:$0xf]
        %v2568 = vld [vmem:[#allocation13 + $0x48] sm:$0xf]
        %v2569 = vld [vmem:[#allocation13 + $0x4c] sm:$0xf]
        %v2570 = vld [vmem:[#allocation13 + $0x50] sm:$0xf]
        %v2571 = vld [vmem:[#allocation13 + $0x54] sm:$0xf]
        %v2572 = vld [vmem:[#allocation13 + $0x58] sm:$0xf]
        %v2573 = vld [vmem:[#allocation13 + $0x5c] sm:$0xf]
        %v2574 = vld [vmem:[#allocation13 + $0x60] sm:$0xf]
        %v2575 = vld [vmem:[#allocation13 + $0x64] sm:$0xf]
        %v2576 = vld [vmem:[#allocation13 + $0x68] sm:$0xf]
        %v2577 = vld [vmem:[#allocation13 + $0x6c] sm:$0xf]
        %v2578 = vld [vmem:[#allocation13 + $0x70] sm:$0xf]
        %v2579 = vld [vmem:[#allocation13 + $0x74] sm:$0xf]
        %v2580 = vld [vmem:[#allocation13 + $0x78] sm:$0xf]
        %v2581 = vld [vmem:[#allocation13 + $0x7c] sm:$0xf]
        %v2582 = vld [vmem:[#allocation13 + $0x80] sm:$0xf]
        %v2583 = vld [vmem:[#allocation13 + $0x84] sm:$0xf]
        %v2584 = vld [vmem:[#allocation13 + $0x88] sm:$0xf]
        %v2585 = vld [vmem:[#allocation13 + $0x8c] sm:$0xf]
        %v2586 = vld [vmem:[#allocation13 + $0x90] sm:$0xf]
        %v2587 = vld [vmem:[#allocation13 + $0x94] sm:$0xf]
        %v2588 = vld [vmem:[#allocation13 + $0x98] sm:$0xf]
        %v2589 = vld [vmem:[#allocation13 + $0x9c] sm:$0xf]
        %v2590 = vld [vmem:[#allocation13 + $0xa0] sm:$0xf]
        %v2591 = vld [vmem:[#allocation13 + $0xa4] sm:$0xf]
        %v2592 = vld [vmem:[#allocation13 + $0xa8] sm:$0xf]
        %v2593 = vld [vmem:[#allocation13 + $0xac] sm:$0xf]
        %v2594 = vld [vmem:[#allocation13 + $0xb0] sm:$0xf]
        %v2595 = vld [vmem:[#allocation13 + $0xb4] sm:$0xf]
        %v2596 = vld [vmem:[#allocation13 + $0xb8] sm:$0xf]
        %v2597 = vld [vmem:[#allocation13 + $0xbc] sm:$0xf]
        %v2598 = vld [vmem:[#allocation13 + $0xc0] sm:$0xf]
        %v2599 = vld [vmem:[#allocation13 + $0xc4] sm:$0xf]
        %v2600 = vld [vmem:[#allocation13 + $0xc8] sm:$0xf]
        %v2601 = vld [vmem:[#allocation13 + $0xcc] sm:$0xf]
        %v2602 = vld [vmem:[#allocation13 + $0xd0] sm:$0xf]
        %v2603 = vld [vmem:[#allocation13 + $0xd4] sm:$0xf]
        %v2604 = vld [vmem:[#allocation13 + $0xd8] sm:$0xf]
        %v2605 = vld [vmem:[#allocation13 + $0xdc] sm:$0xf]
        %v2606 = vld [vmem:[#allocation13 + $0xe0] sm:$0xf]
        %v2607 = vld [vmem:[#allocation13 + $0xe4] sm:$0xf]
        %v2608 = vld [vmem:[#allocation13 + $0xe8] sm:$0xf]
        %v2609 = vld [vmem:[#allocation13 + $0xec] sm:$0xf]
        %v2610 = vld [vmem:[#allocation13 + $0xf0] sm:$0xf]
        %v2611 = vld [vmem:[#allocation13 + $0xf4] sm:$0xf]
        %v2612 = vld [vmem:[#allocation13 + $0xf8] sm:$0xf]
        %v2613 = vld [vmem:[#allocation13 + $0xfc] sm:$0xf]
        %v2614 = vld [vmem:[%s12] sm:$0x1]
        %v2616 = vlaneseq
        %v2617 = vshrl.u32 %v2616, 7
        %v2618 = vsub.s32 0, %v2617
        %v2619 = vrot.slane %v2614, %v2618
        %v2685 = vunpack.c.l.b16 %v2550
        %v2686 = vunpack.c.l.b16 %v2551
        %v2687 = vunpack.c.l.b16 %v2552
        %v2688 = vunpack.c.l.b16 %v2553
        %v2689 = vunpack.c.l.b16 %v2554
        %v2690 = vunpack.c.l.b16 %v2555
        %v2691 = vunpack.c.l.b16 %v2556
        %v2692 = vunpack.c.l.b16 %v2557
        %v2693 = vunpack.c.l.b16 %v2558
        %v2694 = vunpack.c.l.b16 %v2559
        %v2695 = vunpack.c.l.b16 %v2560
        %v2696 = vunpack.c.l.b16 %v2561
        %v2697 = vunpack.c.l.b16 %v2562
        %v2698 = vunpack.c.l.b16 %v2563
        %v2699 = vunpack.c.l.b16 %v2564
        %v2700 = vunpack.c.l.b16 %v2565
        %v2701 = vunpack.c.l.b16 %v2566
        %v2702 = vunpack.c.l.b16 %v2567
        %v2703 = vunpack.c.l.b16 %v2568
        %v2704 = vunpack.c.l.b16 %v2569
        %v2705 = vunpack.c.l.b16 %v2570
        %v2706 = vunpack.c.l.b16 %v2571
        %v2707 = vunpack.c.l.b16 %v2572
        %v2708 = vunpack.c.l.b16 %v2573
        %v2709 = vunpack.c.l.b16 %v2574
        %v2710 = vunpack.c.l.b16 %v2575
        %v2711 = vunpack.c.l.b16 %v2576
        %v2712 = vunpack.c.l.b16 %v2577
        %v2713 = vunpack.c.l.b16 %v2578
        %v2714 = vunpack.c.l.b16 %v2579
        %v2715 = vunpack.c.l.b16 %v2580
        %v2716 = vunpack.c.l.b16 %v2581
        %v2717 = vunpack.c.l.b16 %v2582
        %v2718 = vunpack.c.l.b16 %v2583
        %v2719 = vunpack.c.l.b16 %v2584
        %v2720 = vunpack.c.l.b16 %v2585
        %v2721 = vunpack.c.l.b16 %v2586
        %v2722 = vunpack.c.l.b16 %v2587
        %v2723 = vunpack.c.l.b16 %v2588
        %v2724 = vunpack.c.l.b16 %v2589
        %v2725 = vunpack.c.l.b16 %v2590
        %v2726 = vunpack.c.l.b16 %v2591
        %v2727 = vunpack.c.l.b16 %v2592
        %v2728 = vunpack.c.l.b16 %v2593
        %v2729 = vunpack.c.l.b16 %v2594
        %v2730 = vunpack.c.l.b16 %v2595
        %v2731 = vunpack.c.l.b16 %v2596
        %v2732 = vunpack.c.l.b16 %v2597
        %v2733 = vunpack.c.l.b16 %v2598
        %v2734 = vunpack.c.l.b16 %v2599
        %v2735 = vunpack.c.l.b16 %v2600
        %v2736 = vunpack.c.l.b16 %v2601
        %v2737 = vunpack.c.l.b16 %v2602
        %v2738 = vunpack.c.l.b16 %v2603
        %v2739 = vunpack.c.l.b16 %v2604
        %v2740 = vunpack.c.l.b16 %v2605
        %v2741 = vunpack.c.l.b16 %v2606
        %v2742 = vunpack.c.l.b16 %v2607
        %v2743 = vunpack.c.l.b16 %v2608
        %v2744 = vunpack.c.l.b16 %v2609
        %v2745 = vunpack.c.l.b16 %v2610
        %v2746 = vunpack.c.l.b16 %v2611
        %v2747 = vunpack.c.l.b16 %v2612
        %v2748 = vunpack.c.l.b16 %v2613
        %v2749 = vpack.c.b16 %v2686, %v2685
        %v2750 = vpack.c.b16 %v2688, %v2687
        %v2751 = vpack.c.b16 %v2690, %v2689
        %v2752 = vpack.c.b16 %v2692, %v2691
        %v2753 = vpack.c.b16 %v2694, %v2693
        %v2754 = vpack.c.b16 %v2696, %v2695
        %v2755 = vpack.c.b16 %v2698, %v2697
        %v2756 = vpack.c.b16 %v2700, %v2699
        %v2757 = vpack.c.b16 %v2702, %v2701
        %v2758 = vpack.c.b16 %v2704, %v2703
        %v2759 = vpack.c.b16 %v2706, %v2705
        %v2760 = vpack.c.b16 %v2708, %v2707
        %v2761 = vpack.c.b16 %v2710, %v2709
        %v2762 = vpack.c.b16 %v2712, %v2711
        %v2763 = vpack.c.b16 %v2714, %v2713
        %v2764 = vpack.c.b16 %v2716, %v2715
        %v2765 = vpack.c.b16 %v2718, %v2717
        %v2766 = vpack.c.b16 %v2720, %v2719
        %v2767 = vpack.c.b16 %v2722, %v2721
        %v2768 = vpack.c.b16 %v2724, %v2723
        %v2769 = vpack.c.b16 %v2726, %v2725
        %v2770 = vpack.c.b16 %v2728, %v2727
        %v2771 = vpack.c.b16 %v2730, %v2729
        %v2772 = vpack.c.b16 %v2732, %v2731
        %v2773 = vpack.c.b16 %v2734, %v2733
        %v2774 = vpack.c.b16 %v2736, %v2735
        %v2775 = vpack.c.b16 %v2738, %v2737
        %v2776 = vpack.c.b16 %v2740, %v2739
        %v2777 = vpack.c.b16 %v2742, %v2741
        %v2778 = vpack.c.b16 %v2744, %v2743
        %v2779 = vpack.c.b16 %v2746, %v2745
        %v2780 = vpack.c.b16 %v2748, %v2747
        %2813 = vmatprep.subr.bf16.mxu0 0
        %2814 = vmatpush1.bf16.msra.mxu0 %v2756
        %2815 = vmatprep.subr.bf16.mxu0 0
        %2816 = vmatpush1.bf16.msra.mxu0 %v2755
        %2817 = vmatprep.subr.bf16.mxu0 0
        %2818 = vmatpush1.bf16.msra.mxu0 %v2754
        %2819 = vmatprep.subr.bf16.mxu0 0
        %2820 = vmatpush1.bf16.msra.mxu0 %v2753
        %2821 = vmatprep.subr.bf16.mxu0 0
        %2822 = vmatpush1.bf16.msra.mxu0 %v2752
        %2823 = vmatprep.subr.bf16.mxu0 0
        %2824 = vmatpush1.bf16.msra.mxu0 %v2751
        %2825 = vmatprep.subr.bf16.mxu0 0
        %2826 = vmatpush1.bf16.msra.mxu0 %v2750
        %2827 = vmatprep.subr.bf16.mxu0 0
        %2828 = vmatpush1.bf16.msra.mxu0 %v2749
        %2829 = vmatprep.subr.bf16.mxu0 0
        %2830 = vmatpush2.bf16.msra.mxu0 %v2764
        %2831 = vmatprep.subr.bf16.mxu0 0
        %2832 = vmatpush2.bf16.msra.mxu0 %v2763
        %2833 = vmatprep.subr.bf16.mxu0 0
        %2834 = vmatpush2.bf16.msra.mxu0 %v2762
        %2835 = vmatprep.subr.bf16.mxu0 0
        %2836 = vmatpush2.bf16.msra.mxu0 %v2761
        %2837 = vmatprep.subr.bf16.mxu0 0
        %2838 = vmatpush2.bf16.msra.mxu0 %v2760
        %2839 = vmatprep.subr.bf16.mxu0 0
        %2840 = vmatpush2.bf16.msra.mxu0 %v2759
        %2841 = vmatprep.subr.bf16.mxu0 0
        %2842 = vmatpush2.bf16.msra.mxu0 %v2758
        %2843 = vmatprep.subr.bf16.mxu0 0
        %2844 = vmatpush2.bf16.msra.mxu0 %v2757
        %2845 = vmatprep.mubr.bf16.mxu0 %v2547
        %2846 = vmatmul.mubr.bf16.gmra.mxu0 %v2546
        %v2847 = vpop.f32.mrf.mxu0
        %v2848 = vadd.f32 %v2619, %v2847
        %v2849 = vpop.f32.mrf.mxu0
        %v2850 = vpop.f32.mrf.mxu0
        %v2851 = vpop.f32.mrf.mxu0
        %2852 = vdwg.mxu0
        %2853 = vmatprep.subr.bf16.mxu0 0
        %2854 = vmatpush1.bf16.msra.mxu0 %v2772
        %2855 = vmatprep.subr.bf16.mxu0 0
        %2856 = vmatpush1.bf16.msra.mxu0 %v2771
        %2857 = vmatprep.subr.bf16.mxu0 0
        %2858 = vmatpush1.bf16.msra.mxu0 %v2770
        %2859 = vmatprep.subr.bf16.mxu0 0
        %2860 = vmatpush1.bf16.msra.mxu0 %v2769
        %2861 = vmatprep.subr.bf16.mxu0 0
        %2862 = vmatpush1.bf16.msra.mxu0 %v2768
        %2863 = vmatprep.subr.bf16.mxu0 0
        %2864 = vmatpush1.bf16.msra.mxu0 %v2767
        %2865 = vmatprep.subr.bf16.mxu0 0
        %2866 = vmatpush1.bf16.msra.mxu0 %v2766
        %2867 = vmatprep.subr.bf16.mxu0 0
        %2868 = vmatpush1.bf16.msra.mxu0 %v2765
        %2869 = vmatprep.subr.bf16.mxu0 0
        %2870 = vmatpush2.bf16.msra.mxu0 %v2780
        %2871 = vmatprep.subr.bf16.mxu0 0
        %2872 = vmatpush2.bf16.msra.mxu0 %v2779
        %2873 = vmatprep.subr.bf16.mxu0 0
        %2874 = vmatpush2.bf16.msra.mxu0 %v2778
        %2875 = vmatprep.subr.bf16.mxu0 0
        %2876 = vmatpush2.bf16.msra.mxu0 %v2777
        %2877 = vmatprep.subr.bf16.mxu0 0
        %2878 = vmatpush2.bf16.msra.mxu0 %v2776
        %2879 = vmatprep.subr.bf16.mxu0 0
        %2880 = vmatpush2.bf16.msra.mxu0 %v2775
        %2881 = vmatprep.subr.bf16.mxu0 0
        %2882 = vmatpush2.bf16.msra.mxu0 %v2774
        %2883 = vmatprep.subr.bf16.mxu0 0
        %2884 = vmatpush2.bf16.msra.mxu0 %v2773
        %2885 = vmatprep.mubr.bf16.mxu0 %v2549
        %2886 = vmatmul.mubr.bf16.gmra.mxu0 %v2548
        %v2887 = vpop.f32.mrf.mxu0
        %v2888 = vadd.f32 %v2848, %v2887
        %v2889 = vpop.f32.mrf.mxu0
        %v2890 = vpop.f32.mrf.mxu0
        %v2891 = vpop.f32.mrf.mxu0
        %2892 = vdwg.mxu0
        %v2893 = vadd.f32 %v2185, %v2888
        %2894 = vst [vmem:[%s538] sm:$0xff] %v2893
        %s2895 = sand.u32 %s319, 1
        %s2896 = scalar_lea.sflag [#allocation4], %s2895
        %s2897 = sand.u32 %s319, 1
        %s2898 = smul.addr %s2897, 8
        %s2899 = scalar_lea.vmem [#allocation14], %s2898
        // Predicated region
        $region101: #{tpu_custom_call.1} parent=71 // pred_check
          %p2900 = pneg %p329
        $region102: #{tpu_custom_call.1} parent=71 // pred_check_branch
          %2902 = sbr.rel (%p2900) target = $region104
        $region103: #{tpu_custom_call.1} parent=71 // pred_region
          %s2904 = ssub.s32 128, 128
          %2905 = vsyncadd %s2896, %s2904
          %s2906 = smul.addr %s33, 128
          %s2907 = scalar_lea.hbm %s13, %s2906
          %s2909 = sshll.u32 %s2899, 4
          %s2910 = int_to_ptr.vmem [resolvable:$true] %s2909
          %2912 = dma.vmem_to_hbm [thread:$0]  %s2910, 128, %s2907, %s2896
        $region104: #{tpu_custom_call.1} parent=71 // pred_fallthru
          _
      $region72: #{tpu_custom_call.1} parent=5 // pred_fallthru
        _
      %p2913 = scmp.le.s32.totalorder 2, %s28
      // Predicated region
      $region105: #{tpu_custom_call.1} parent=5 // pred_check
        %p2914 = pneg %p2913
      $region106: #{tpu_custom_call.1} parent=5 // pred_check_branch
        %2916 = sbr.rel (%p2914) target = $region108
      $region107: #{tpu_custom_call.1} parent=5 // pred_region
        %s2917 = ssub.s32 %s28, 2
        // Predicated region
        $region109: #{tpu_custom_call.1} parent=107 // pred_check
          %p2918 = pneg %p335
        $region110: #{tpu_custom_call.1} parent=107 // pred_check_branch
          %2920 = sbr.rel (%p2918) target = $region112
        $region111: #{tpu_custom_call.1} parent=107 // pred_region
          %s2921 = sand.u32 %s320, 1
          %s2922 = scalar_lea.sflag [#allocation4], %s2921
          %s2923 = sand.u32 %s320, 1
          %s2924 = smul.addr %s2923, 8
          %s2925 = scalar_lea.vmem [#allocation14], %s2924
          %2926 = dma.done %s2922, 128
        $region112: #{tpu_custom_call.1} parent=107 // pred_fallthru
          _
      $region108: #{tpu_custom_call.1} parent=5 // pred_fallthru
        _
    $region6: #{tpu_custom_call.1} parent=1 // loop_footer
      %s32 = sadd.s32 1, %s28
    $region7: #{tpu_custom_call.1} parent=1 // loop_footer_branch
      %27 = sbr.rel target = $region3
    $region8: #{tpu_custom_call.1} parent=1 // loop_exit
      _
    %2927 = vsyncpa [#allocation3], 1
    %s2928 = scalar_lea.sflag [#allocation3], 1
    %2929 = vsyncpa %s2928, 1
    %2930 = vsyncpa [#allocation6], 1
    %2931 = vsyncpa [#allocation9], 1
    %2932 = vsyncpa [#allocation12], 1
    %2933 = vsyncpa [#allocation4], 1
    %s2934 = scalar_lea.sflag [#allocation4], 1
    %2935 = vsyncpa %s2934, 1

</llo_original>
